<compile_context>
chip_gen: v6e
topology: v6e:2x2x1
jax: 0.10.0
libtpu: 0.0.40
codegen_flags: <defaults>
</compile_context>

<pallas_src>
import functools

import jax
import jax.numpy as jnp
from jax.experimental import pallas as pl
from jax.experimental.pallas import tpu as pltpu


# ---------------------------------------------------------------------------
# Pallas kernel: LSTM recurrence only (PyTorch gate order i, f, g, o).
#   gx_ref : (Tb, B, 4H) f32  precomputed x_t @ W_ih + (b_ih + b_hh)
#   whh_ref: (H, 4H)     bf16 recurrent weight (transposed), resident
#   hlast  : (B, H)      f32  written once at the final grid step
#   h_sc/c_sc: (B, H)    f32  recurrent state carried across grid iterations
# ---------------------------------------------------------------------------
def _lstm_recurrence_kernel(gx_ref, whh_ref, hlast_ref, h_sc, c_sc, *, tb, hdim):
    @pl.when(pl.program_id(0) == 0)
    def _init():
        h_sc[...] = jnp.zeros_like(h_sc)   # h0 = 0
        c_sc[...] = jnp.zeros_like(c_sc)   # c0 = 0

    def step(s, carry):
        h, c = carry
        # (B, 4H): precomputed input projection + recurrent projection (MXU, bf16 in / f32 acc)
        gates = gx_ref[s] + jnp.dot(h.astype(jnp.bfloat16), whh_ref[...],
                                    preferred_element_type=jnp.float32)
        i = jax.nn.sigmoid(gates[:, 0 * hdim:1 * hdim])
        f = jax.nn.sigmoid(gates[:, 1 * hdim:2 * hdim])
        g = jnp.tanh(gates[:, 2 * hdim:3 * hdim])
        o = jax.nn.sigmoid(gates[:, 3 * hdim:4 * hdim])
        c = f * c + i * g                  # f32 state / f32 elementwise (v5e-safe)
        h = o * jnp.tanh(c)
        return (h, c)

    h, c = jax.lax.fori_loop(0, tb, step, (h_sc[...], c_sc[...]), unroll=True)
    h_sc[...] = h
    c_sc[...] = c

    @pl.when(pl.program_id(0) == pl.num_programs(0) - 1)
    def _finalize():
        hlast_ref[...] = h


# ---------------------------------------------------------------------------
# Wrapper
# ---------------------------------------------------------------------------
def encoder_forward(sents, eps, params, *, tb_hint=8):
    """sents: int32 (B, T); eps: f32 (B, L).  Returns (z, h_last.data, h_last)."""
    emb = params["embedding"]                               # (V, D)
    # Embedding gather directly in time-major layout (avoids an HBM transpose pass).
    x = jnp.take(emb, sents.T, axis=0).astype(jnp.float32)  # (T, B, D)
    # enc_dropout: nn.Dropout in eval mode == identity (deterministic forward)

    T, B, D = x.shape
    H = params["w_hh_t"].shape[0]
    G = 4 * H

    # Hoisted input projection: one big (T*B, D) @ (D, 4H) matmul in XLA,
    # bf16 operands / f32 accumulation, with the combined LSTM bias folded in.
    gates_x = jnp.einsum(
        "tbd,dg->tbg",
        x.astype(jnp.bfloat16),
        params["w_ih_t"].astype(jnp.bfloat16),
        preferred_element_type=jnp.float32,
    ) + params["b"][0]                                       # (T, B, 4H) f32

    # Pick a timestep block size that divides T.
    tb = 1
    for cand in (tb_hint, 8, 4, 2, 1):
        if cand and T % cand == 0:
            tb = cand
            break

    w_hh_bf16 = params["w_hh_t"].astype(jnp.bfloat16)        # (H, 4H) bf16, resident

    # Explicit VMEM budget from the actual resident footprint (with headroom),
    # capped well under v7x's 64 MiB physical VMEM.
    vmem_bytes = (2 * tb * B * G * 4      # double-buffered gates_x blocks (f32)
                  + H * G * 2             # single-buffered bf16 W_hh
                  + 2 * B * H * 4         # h_last output buffer
                  + 2 * B * H * 4)        # h/c scratch
    vmem_limit = int(min(max(2 * vmem_bytes + (4 << 20), 16 << 20), 48 << 20))

    h_last = pl.pallas_call(
        functools.partial(_lstm_recurrence_kernel, tb=tb, hdim=H),
        out_shape=jax.ShapeDtypeStruct((B, H), jnp.float32),
        grid_spec=pltpu.PrefetchScalarGridSpec(
            num_scalar_prefetch=0,
            grid=(T // tb,),
            in_specs=[
                # Tb timesteps of precomputed gates per grid iteration.
                pl.BlockSpec((tb, B, G), lambda t: (t, 0, 0)),
                # Recurrent weight: constant index -> single-buffer (no dead duplication).
                pl.BlockSpec((H, G), lambda t: (0, 0), pipeline_mode=pl.Buffered(1)),
            ],
            out_specs=pl.BlockSpec((B, H), lambda t: (0, 0)),
            scratch_shapes=[pltpu.VMEM((B, H), jnp.float32),   # h state
                            pltpu.VMEM((B, H), jnp.float32)],  # c state
        ),
        compiler_params=pltpu.CompilerParams(
            dimension_semantics=("arbitrary",),   # sequential recurrence over time
            vmem_limit_bytes=vmem_limit),
    )(gates_x, w_hh_bf16)

    # latent_linear(concat(h_last, eps)) == h_last @ W_h + eps @ W_e + b.
    # L=32 (< 128 lanes) -> done in XLA to avoid masked partial stores in-kernel.
    z = (h_last @ params["w_lat_h_t"]
         + eps.astype(jnp.float32) @ params["w_lat_e_t"]
         + params["b_lat"][0])

    # (z, enc_h_states_last.data, enc_h_states_last)
    return z, jax.lax.stop_gradient(h_last), h_last


# ---------------------------------------------------------------------------
# Pure-JAX f32 reference (for correctness check)
# ---------------------------------------------------------------------------
def encoder_reference(sents, eps, params):
    emb = params["embedding"]
    x = jnp.take(emb, sents, axis=0).astype(jnp.float32)   # (B, T, D)
    B = x.shape[0]
    H = params["w_hh_t"].shape[0]

    def step(carry, x_t):
        h, c = carry
        gates = x_t @ params["w_ih_t"] + h @ params["w_hh_t"] + params["b"][0]
        i = jax.nn.sigmoid(gates[:, 0 * H:1 * H])
        f = jax.nn.sigmoid(gates[:, 1 * H:2 * H])
        g = jnp.tanh(gates[:, 2 * H:3 * H])
        o = jax.nn.sigmoid(gates[:, 3 * H:4 * H])
        c = f * c + i * g
        h = o * jnp.tanh(c)
        return (h, c), h

    h0 = jnp.zeros((B, H), jnp.float32)
    c0 = jnp.zeros((B, H), jnp.float32)
    (h_last, _), _ = jax.lax.scan(step, (h0, c0), jnp.transpose(x, (1, 0, 2)))
    z = (h_last @ params["w_lat_h_t"] + eps @ params["w_lat_e_t"]
         + params["b_lat"][0])
    return z, h_last


# ---------------------------------------------------------------------------
# Deterministic parameter init (synthetic — shapes from Encoder.__init__)
# ---------------------------------------------------------------------------
def init_params(key, vocab_size, enc_word_dim, enc_h_dim, latent_dim):
    ks = jax.random.split(key, 8)
    k_hdim = 1.0 / jnp.sqrt(enc_h_dim)
    k_lat = 1.0 / jnp.sqrt(enc_h_dim + latent_dim)
    D, H, L = enc_word_dim, enc_h_dim, latent_dim
    return {
        # nn.Embedding(vocab, D), uniform(-0.1, 0.1)
        "embedding": jax.random.uniform(ks[0], (vocab_size, D), jnp.float32, -0.1, 0.1),
        # nn.LSTM(D, H): weight_ih (4H, D), weight_hh (4H, H) — stored transposed
        "w_ih_t": jax.random.uniform(ks[1], (D, 4 * H), jnp.float32, -k_hdim, k_hdim),
        "w_hh_t": jax.random.uniform(ks[2], (H, 4 * H), jnp.float32, -k_hdim, k_hdim),
        # b_ih + b_hh combined
        "b": jax.random.uniform(ks[3], (1, 4 * H), jnp.float32, -k_hdim, k_hdim),
        # nn.Linear(H + L, L): weight (L, H+L), bias (L,) — stored transposed + split
        "w_lat_h_t": jax.random.uniform(ks[4], (H, L), jnp.float32, -k_lat, k_lat),
        "w_lat_e_t": jax.random.uniform(ks[5], (L, L), jnp.float32, -k_lat, k_lat),
        "b_lat": jax.random.uniform(ks[6], (1, L), jnp.float32, -k_lat, k_lat),
    }


if __name__ == "__main__":
    # Small shapes consistent with the module (scaled down from 20001/512/1024/32).
    # H kept a multiple of 128 so gate slices stay lane-aligned.
    VOCAB, D, H, L = 100, 64, 128, 32
    B, T = 8, 16

    key = jax.random.PRNGKey(0)
    k_params, k_sents, k_eps = jax.random.split(key, 3)

    params = init_params(k_params, VOCAB, D, H, L)
    sents = jax.random.randint(k_sents, (B, T), 0, VOCAB, dtype=jnp.int32)
    eps = jax.random.normal(k_eps, (B, L), jnp.float32)

    z, h_last_data, h_last = encoder_forward(sents, eps, params)
    jax.block_until_ready((z, h_last_data, h_last))

    z_ref, h_ref = encoder_reference(sents, eps, params)
    # Tolerances loosened vs. the pure-f32 reference because MXU operands are bf16
    # (f32 accumulation / f32 recurrence state keep the drift small).
    assert jnp.allclose(h_last, h_ref, atol=2e-2, rtol=2e-2), "h_last mismatch"
    assert jnp.allclose(z, z_ref, atol=2e-2, rtol=2e-2), "z mismatch"

    print("KERNEL_OK")
</pallas_src>

<mosaic_0001>
module attributes {stable_mosaic.version = 11 : i64} {
  func.func @_lstm_recurrence_kernel(%arg0: i32, %arg1: memref<8x8x512xf32, #tpu.memory_space<vmem>>, %arg2: memref<128x512xbf16, #tpu.memory_space<vmem>>, %arg3: memref<8x128xf32, #tpu.memory_space<vmem>>, %arg4: memref<8x128xf32, #tpu.memory_space<vmem>>, %arg5: memref<8x128xf32, #tpu.memory_space<vmem>>) attributes {dimension_semantics = [#tpu.dimension_semantics<arbitrary>], iteration_bounds = array<i64: 2>, scalar_prefetch = 0 : i64, scratch_operands = 2 : i64, tpu.core_type = #tpu.core_type<tc>, window_params = [{transform_indices = @transform_0, window_bounds = array<i64: 8, 8, 512>}, {pipeline_mode = #tpu.pipeline_mode<synchronous>, transform_indices = @transform_1, window_bounds = array<i64: 128, 512>}, {pipeline_mode = #tpu.pipeline_mode<synchronous>, transform_indices = @transform_2, window_bounds = array<i64: 8, 128>}]} {
    %c0_i32 = arith.constant 0 : i32
    %0 = arith.cmpi eq, %arg0, %c0_i32 : i32
    %1 = arith.extui %0 : i1 to i32
    %c0_i32_0 = arith.constant 0 : i32
    %2 = arith.cmpi ne, %1, %c0_i32_0 : i32
    scf.if %2 {
      %cst_74 = arith.constant 0.000000e+00 : f32
      %266 = vector.broadcast %cst_74 : f32 to vector<8x128xf32>
      %c0_75 = arith.constant 0 : index
      %c0_76 = arith.constant 0 : index
      %267 = vector.load %arg4[%c0_75, %c0_76] : memref<8x128xf32, #tpu.memory_space<vmem>>, vector<8x128xf32>
      tpu.vector_store %arg4[%c0_75, %c0_76], %266 {strides = array<i32>} : memref<8x128xf32, #tpu.memory_space<vmem>>, vector<8x128xf32>,
      %cst_77 = arith.constant 0.000000e+00 : f32
      %268 = vector.broadcast %cst_77 : f32 to vector<8x128xf32>
      %c0_78 = arith.constant 0 : index
      %c0_79 = arith.constant 0 : index
      %269 = vector.load %arg5[%c0_78, %c0_79] : memref<8x128xf32, #tpu.memory_space<vmem>>, vector<8x128xf32>
      tpu.vector_store %arg5[%c0_78, %c0_79], %268 {strides = array<i32>} : memref<8x128xf32, #tpu.memory_space<vmem>>, vector<8x128xf32>,
    } else {
    }
    %c0 = arith.constant 0 : index
    %c0_1 = arith.constant 0 : index
    %3 = vector.load %arg4[%c0, %c0_1] : memref<8x128xf32, #tpu.memory_space<vmem>>, vector<8x128xf32>
    %c0_2 = arith.constant 0 : index
    %c0_3 = arith.constant 0 : index
    %4 = vector.load %arg5[%c0_2, %c0_3] : memref<8x128xf32, #tpu.memory_space<vmem>>, vector<8x128xf32>
    %c0_i32_4 = arith.constant 0 : i32
    %5 = arith.index_cast %c0_i32_4 : i32 to index
    %c0_5 = arith.constant 0 : index
    %c0_6 = arith.constant 0 : index
    %6 = vector.load %arg1[%5, %c0_5, %c0_6] : memref<8x8x512xf32, #tpu.memory_space<vmem>>, vector<1x8x512xf32>
    %7 = vector.shape_cast %6 : vector<1x8x512xf32> to vector<8x512xf32>
    %8 = arith.truncf %3 : vector<8x128xf32> to vector<8x128xbf16>
    %c0_7 = arith.constant 0 : index
    %c0_8 = arith.constant 0 : index
    %9 = vector.load %arg2[%c0_7, %c0_8] : memref<128x512xbf16, #tpu.memory_space<vmem>>, vector<128x512xbf16>
    %cst = arith.constant dense<0.000000e+00> : vector<8x512xf32>
    %10 = tpu.matmul %8, %9, %cst {dimension_numbers = #tpu.dot_dimension_numbers<[1], [0], [0], [1], [0, 0, 1, 1], [], []>} : vector<8x128xbf16>, vector<128x512xbf16>, vector<8x512xf32> -> vector<8x512xf32>
    %11 = arith.addf %7, %10 : vector<8x512xf32>
    %12 = vector.extract_strided_slice %11 {offsets = [0, 0], sizes = [8, 128], strides = [1, 1]} : vector<8x512xf32> to vector<8x128xf32>
    %13 = arith.negf %12 : vector<8x128xf32>
    %14 = math.exp %13 : vector<8x128xf32>
    %cst_9 = arith.constant 1.000000e+00 : f32
    %15 = vector.broadcast %cst_9 : f32 to vector<8x128xf32>
    %16 = arith.addf %15, %14 : vector<8x128xf32>
    %17 = arith.divf %15, %16 : vector<8x128xf32>
    %18 = vector.extract_strided_slice %11 {offsets = [0, 128], sizes = [8, 128], strides = [1, 1]} : vector<8x512xf32> to vector<8x128xf32>
    %19 = arith.negf %18 : vector<8x128xf32>
    %20 = math.exp %19 : vector<8x128xf32>
    %cst_10 = arith.constant 1.000000e+00 : f32
    %21 = vector.broadcast %cst_10 : f32 to vector<8x128xf32>
    %22 = arith.addf %21, %20 : vector<8x128xf32>
    %23 = arith.divf %21, %22 : vector<8x128xf32>
    %24 = vector.extract_strided_slice %11 {offsets = [0, 256], sizes = [8, 128], strides = [1, 1]} : vector<8x512xf32> to vector<8x128xf32>
    %25 = math.tanh %24 : vector<8x128xf32>
    %26 = vector.extract_strided_slice %11 {offsets = [0, 384], sizes = [8, 128], strides = [1, 1]} : vector<8x512xf32> to vector<8x128xf32>
    %27 = arith.negf %26 : vector<8x128xf32>
    %28 = math.exp %27 : vector<8x128xf32>
    %cst_11 = arith.constant 1.000000e+00 : f32
    %29 = vector.broadcast %cst_11 : f32 to vector<8x128xf32>
    %30 = arith.addf %29, %28 : vector<8x128xf32>
    %31 = arith.divf %29, %30 : vector<8x128xf32>
    %32 = arith.mulf %23, %4 : vector<8x128xf32>
    %33 = arith.mulf %17, %25 : vector<8x128xf32>
    %34 = arith.addf %32, %33 : vector<8x128xf32>
    %35 = math.tanh %34 : vector<8x128xf32>
    %36 = arith.mulf %31, %35 : vector<8x128xf32>
    %c1_i32 = arith.constant 1 : i32
    %37 = arith.index_cast %c1_i32 : i32 to index
    %c0_12 = arith.constant 0 : index
    %c0_13 = arith.constant 0 : index
    %38 = vector.load %arg1[%37, %c0_12, %c0_13] : memref<8x8x512xf32, #tpu.memory_space<vmem>>, vector<1x8x512xf32>
    %39 = vector.shape_cast %38 : vector<1x8x512xf32> to vector<8x512xf32>
    %40 = arith.truncf %36 : vector<8x128xf32> to vector<8x128xbf16>
    %c0_14 = arith.constant 0 : index
    %c0_15 = arith.constant 0 : index
    %41 = vector.load %arg2[%c0_14, %c0_15] : memref<128x512xbf16, #tpu.memory_space<vmem>>, vector<128x512xbf16>
    %cst_16 = arith.constant dense<0.000000e+00> : vector<8x512xf32>
    %42 = tpu.matmul %40, %41, %cst_16 {dimension_numbers = #tpu.dot_dimension_numbers<[1], [0], [0], [1], [0, 0, 1, 1], [], []>} : vector<8x128xbf16>, vector<128x512xbf16>, vector<8x512xf32> -> vector<8x512xf32>
    %43 = arith.addf %39, %42 : vector<8x512xf32>
    %44 = vector.extract_strided_slice %43 {offsets = [0, 0], sizes = [8, 128], strides = [1, 1]} : vector<8x512xf32> to vector<8x128xf32>
    %45 = arith.negf %44 : vector<8x128xf32>
    %46 = math.exp %45 : vector<8x128xf32>
    %cst_17 = arith.constant 1.000000e+00 : f32
    %47 = vector.broadcast %cst_17 : f32 to vector<8x128xf32>
    %48 = arith.addf %47, %46 : vector<8x128xf32>
    %49 = arith.divf %47, %48 : vector<8x128xf32>
    %50 = vector.extract_strided_slice %43 {offsets = [0, 128], sizes = [8, 128], strides = [1, 1]} : vector<8x512xf32> to vector<8x128xf32>
    %51 = arith.negf %50 : vector<8x128xf32>
    %52 = math.exp %51 : vector<8x128xf32>
    %cst_18 = arith.constant 1.000000e+00 : f32
    %53 = vector.broadcast %cst_18 : f32 to vector<8x128xf32>
    %54 = arith.addf %53, %52 : vector<8x128xf32>
    %55 = arith.divf %53, %54 : vector<8x128xf32>
    %56 = vector.extract_strided_slice %43 {offsets = [0, 256], sizes = [8, 128], strides = [1, 1]} : vector<8x512xf32> to vector<8x128xf32>
    %57 = math.tanh %56 : vector<8x128xf32>
    %58 = vector.extract_strided_slice %43 {offsets = [0, 384], sizes = [8, 128], strides = [1, 1]} : vector<8x512xf32> to vector<8x128xf32>
    %59 = arith.negf %58 : vector<8x128xf32>
    %60 = math.exp %59 : vector<8x128xf32>
    %cst_19 = arith.constant 1.000000e+00 : f32
    %61 = vector.broadcast %cst_19 : f32 to vector<8x128xf32>
    %62 = arith.addf %61, %60 : vector<8x128xf32>
    %63 = arith.divf %61, %62 : vector<8x128xf32>
    %64 = arith.mulf %55, %34 : vector<8x128xf32>
    %65 = arith.mulf %49, %57 : vector<8x128xf32>
    %66 = arith.addf %64, %65 : vector<8x128xf32>
    %67 = math.tanh %66 : vector<8x128xf32>
    %68 = arith.mulf %63, %67 : vector<8x128xf32>
    %c2_i32 = arith.constant 2 : i32
    %69 = arith.index_cast %c2_i32 : i32 to index
    %c0_20 = arith.constant 0 : index
    %c0_21 = arith.constant 0 : index
    %70 = vector.load %arg1[%69, %c0_20, %c0_21] : memref<8x8x512xf32, #tpu.memory_space<vmem>>, vector<1x8x512xf32>
    %71 = vector.shape_cast %70 : vector<1x8x512xf32> to vector<8x512xf32>
    %72 = arith.truncf %68 : vector<8x128xf32> to vector<8x128xbf16>
    %c0_22 = arith.constant 0 : index
    %c0_23 = arith.constant 0 : index
    %73 = vector.load %arg2[%c0_22, %c0_23] : memref<128x512xbf16, #tpu.memory_space<vmem>>, vector<128x512xbf16>
    %cst_24 = arith.constant dense<0.000000e+00> : vector<8x512xf32>
    %74 = tpu.matmul %72, %73, %cst_24 {dimension_numbers = #tpu.dot_dimension_numbers<[1], [0], [0], [1], [0, 0, 1, 1], [], []>} : vector<8x128xbf16>, vector<128x512xbf16>, vector<8x512xf32> -> vector<8x512xf32>
    %75 = arith.addf %71, %74 : vector<8x512xf32>
    %76 = vector.extract_strided_slice %75 {offsets = [0, 0], sizes = [8, 128], strides = [1, 1]} : vector<8x512xf32> to vector<8x128xf32>
    %77 = arith.negf %76 : vector<8x128xf32>
    %78 = math.exp %77 : vector<8x128xf32>
    %cst_25 = arith.constant 1.000000e+00 : f32
    %79 = vector.broadcast %cst_25 : f32 to vector<8x128xf32>
    %80 = arith.addf %79, %78 : vector<8x128xf32>
    %81 = arith.divf %79, %80 : vector<8x128xf32>
    %82 = vector.extract_strided_slice %75 {offsets = [0, 128], sizes = [8, 128], strides = [1, 1]} : vector<8x512xf32> to vector<8x128xf32>
    %83 = arith.negf %82 : vector<8x128xf32>
    %84 = math.exp %83 : vector<8x128xf32>
    %cst_26 = arith.constant 1.000000e+00 : f32
    %85 = vector.broadcast %cst_26 : f32 to vector<8x128xf32>
    %86 = arith.addf %85, %84 : vector<8x128xf32>
    %87 = arith.divf %85, %86 : vector<8x128xf32>
    %88 = vector.extract_strided_slice %75 {offsets = [0, 256], sizes = [8, 128], strides = [1, 1]} : vector<8x512xf32> to vector<8x128xf32>
    %89 = math.tanh %88 : vector<8x128xf32>
    %90 = vector.extract_strided_slice %75 {offsets = [0, 384], sizes = [8, 128], strides = [1, 1]} : vector<8x512xf32> to vector<8x128xf32>
    %91 = arith.negf %90 : vector<8x128xf32>
    %92 = math.exp %91 : vector<8x128xf32>
    %cst_27 = arith.constant 1.000000e+00 : f32
    %93 = vector.broadcast %cst_27 : f32 to vector<8x128xf32>
    %94 = arith.addf %93, %92 : vector<8x128xf32>
    %95 = arith.divf %93, %94 : vector<8x128xf32>
    %96 = arith.mulf %87, %66 : vector<8x128xf32>
    %97 = arith.mulf %81, %89 : vector<8x128xf32>
    %98 = arith.addf %96, %97 : vector<8x128xf32>
    %99 = math.tanh %98 : vector<8x128xf32>
    %100 = arith.mulf %95, %99 : vector<8x128xf32>
    %c3_i32 = arith.constant 3 : i32
    %101 = arith.index_cast %c3_i32 : i32 to index
    %c0_28 = arith.constant 0 : index
    %c0_29 = arith.constant 0 : index
    %102 = vector.load %arg1[%101, %c0_28, %c0_29] : memref<8x8x512xf32, #tpu.memory_space<vmem>>, vector<1x8x512xf32>
    %103 = vector.shape_cast %102 : vector<1x8x512xf32> to vector<8x512xf32>
    %104 = arith.truncf %100 : vector<8x128xf32> to vector<8x128xbf16>
    %c0_30 = arith.constant 0 : index
    %c0_31 = arith.constant 0 : index
    %105 = vector.load %arg2[%c0_30, %c0_31] : memref<128x512xbf16, #tpu.memory_space<vmem>>, vector<128x512xbf16>
    %cst_32 = arith.constant dense<0.000000e+00> : vector<8x512xf32>
    %106 = tpu.matmul %104, %105, %cst_32 {dimension_numbers = #tpu.dot_dimension_numbers<[1], [0], [0], [1], [0, 0, 1, 1], [], []>} : vector<8x128xbf16>, vector<128x512xbf16>, vector<8x512xf32> -> vector<8x512xf32>
    %107 = arith.addf %103, %106 : vector<8x512xf32>
    %108 = vector.extract_strided_slice %107 {offsets = [0, 0], sizes = [8, 128], strides = [1, 1]} : vector<8x512xf32> to vector<8x128xf32>
    %109 = arith.negf %108 : vector<8x128xf32>
    %110 = math.exp %109 : vector<8x128xf32>
    %cst_33 = arith.constant 1.000000e+00 : f32
    %111 = vector.broadcast %cst_33 : f32 to vector<8x128xf32>
    %112 = arith.addf %111, %110 : vector<8x128xf32>
    %113 = arith.divf %111, %112 : vector<8x128xf32>
    %114 = vector.extract_strided_slice %107 {offsets = [0, 128], sizes = [8, 128], strides = [1, 1]} : vector<8x512xf32> to vector<8x128xf32>
    %115 = arith.negf %114 : vector<8x128xf32>
    %116 = math.exp %115 : vector<8x128xf32>
    %cst_34 = arith.constant 1.000000e+00 : f32
    %117 = vector.broadcast %cst_34 : f32 to vector<8x128xf32>
    %118 = arith.addf %117, %116 : vector<8x128xf32>
    %119 = arith.divf %117, %118 : vector<8x128xf32>
    %120 = vector.extract_strided_slice %107 {offsets = [0, 256], sizes = [8, 128], strides = [1, 1]} : vector<8x512xf32> to vector<8x128xf32>
    %121 = math.tanh %120 : vector<8x128xf32>
    %122 = vector.extract_strided_slice %107 {offsets = [0, 384], sizes = [8, 128], strides = [1, 1]} : vector<8x512xf32> to vector<8x128xf32>
    %123 = arith.negf %122 : vector<8x128xf32>
    %124 = math.exp %123 : vector<8x128xf32>
    %cst_35 = arith.constant 1.000000e+00 : f32
    %125 = vector.broadcast %cst_35 : f32 to vector<8x128xf32>
    %126 = arith.addf %125, %124 : vector<8x128xf32>
    %127 = arith.divf %125, %126 : vector<8x128xf32>
    %128 = arith.mulf %119, %98 : vector<8x128xf32>
    %129 = arith.mulf %113, %121 : vector<8x128xf32>
    %130 = arith.addf %128, %129 : vector<8x128xf32>
    %131 = math.tanh %130 : vector<8x128xf32>
    %132 = arith.mulf %127, %131 : vector<8x128xf32>
    %c4_i32 = arith.constant 4 : i32
    %133 = arith.index_cast %c4_i32 : i32 to index
    %c0_36 = arith.constant 0 : index
    %c0_37 = arith.constant 0 : index
    %134 = vector.load %arg1[%133, %c0_36, %c0_37] : memref<8x8x512xf32, #tpu.memory_space<vmem>>, vector<1x8x512xf32>
    %135 = vector.shape_cast %134 : vector<1x8x512xf32> to vector<8x512xf32>
    %136 = arith.truncf %132 : vector<8x128xf32> to vector<8x128xbf16>
    %c0_38 = arith.constant 0 : index
    %c0_39 = arith.constant 0 : index
    %137 = vector.load %arg2[%c0_38, %c0_39] : memref<128x512xbf16, #tpu.memory_space<vmem>>, vector<128x512xbf16>
    %cst_40 = arith.constant dense<0.000000e+00> : vector<8x512xf32>
    %138 = tpu.matmul %136, %137, %cst_40 {dimension_numbers = #tpu.dot_dimension_numbers<[1], [0], [0], [1], [0, 0, 1, 1], [], []>} : vector<8x128xbf16>, vector<128x512xbf16>, vector<8x512xf32> -> vector<8x512xf32>
    %139 = arith.addf %135, %138 : vector<8x512xf32>
    %140 = vector.extract_strided_slice %139 {offsets = [0, 0], sizes = [8, 128], strides = [1, 1]} : vector<8x512xf32> to vector<8x128xf32>
    %141 = arith.negf %140 : vector<8x128xf32>
    %142 = math.exp %141 : vector<8x128xf32>
    %cst_41 = arith.constant 1.000000e+00 : f32
    %143 = vector.broadcast %cst_41 : f32 to vector<8x128xf32>
    %144 = arith.addf %143, %142 : vector<8x128xf32>
    %145 = arith.divf %143, %144 : vector<8x128xf32>
    %146 = vector.extract_strided_slice %139 {offsets = [0, 128], sizes = [8, 128], strides = [1, 1]} : vector<8x512xf32> to vector<8x128xf32>
    %147 = arith.negf %146 : vector<8x128xf32>
    %148 = math.exp %147 : vector<8x128xf32>
    %cst_42 = arith.constant 1.000000e+00 : f32
    %149 = vector.broadcast %cst_42 : f32 to vector<8x128xf32>
    %150 = arith.addf %149, %148 : vector<8x128xf32>
    %151 = arith.divf %149, %150 : vector<8x128xf32>
    %152 = vector.extract_strided_slice %139 {offsets = [0, 256], sizes = [8, 128], strides = [1, 1]} : vector<8x512xf32> to vector<8x128xf32>
    %153 = math.tanh %152 : vector<8x128xf32>
    %154 = vector.extract_strided_slice %139 {offsets = [0, 384], sizes = [8, 128], strides = [1, 1]} : vector<8x512xf32> to vector<8x128xf32>
    %155 = arith.negf %154 : vector<8x128xf32>
    %156 = math.exp %155 : vector<8x128xf32>
    %cst_43 = arith.constant 1.000000e+00 : f32
    %157 = vector.broadcast %cst_43 : f32 to vector<8x128xf32>
    %158 = arith.addf %157, %156 : vector<8x128xf32>
    %159 = arith.divf %157, %158 : vector<8x128xf32>
    %160 = arith.mulf %151, %130 : vector<8x128xf32>
    %161 = arith.mulf %145, %153 : vector<8x128xf32>
    %162 = arith.addf %160, %161 : vector<8x128xf32>
    %163 = math.tanh %162 : vector<8x128xf32>
    %164 = arith.mulf %159, %163 : vector<8x128xf32>
    %c5_i32 = arith.constant 5 : i32
    %165 = arith.index_cast %c5_i32 : i32 to index
    %c0_44 = arith.constant 0 : index
    %c0_45 = arith.constant 0 : index
    %166 = vector.load %arg1[%165, %c0_44, %c0_45] : memref<8x8x512xf32, #tpu.memory_space<vmem>>, vector<1x8x512xf32>
    %167 = vector.shape_cast %166 : vector<1x8x512xf32> to vector<8x512xf32>
    %168 = arith.truncf %164 : vector<8x128xf32> to vector<8x128xbf16>
    %c0_46 = arith.constant 0 : index
    %c0_47 = arith.constant 0 : index
    %169 = vector.load %arg2[%c0_46, %c0_47] : memref<128x512xbf16, #tpu.memory_space<vmem>>, vector<128x512xbf16>
    %cst_48 = arith.constant dense<0.000000e+00> : vector<8x512xf32>
    %170 = tpu.matmul %168, %169, %cst_48 {dimension_numbers = #tpu.dot_dimension_numbers<[1], [0], [0], [1], [0, 0, 1, 1], [], []>} : vector<8x128xbf16>, vector<128x512xbf16>, vector<8x512xf32> -> vector<8x512xf32>
    %171 = arith.addf %167, %170 : vector<8x512xf32>
    %172 = vector.extract_strided_slice %171 {offsets = [0, 0], sizes = [8, 128], strides = [1, 1]} : vector<8x512xf32> to vector<8x128xf32>
    %173 = arith.negf %172 : vector<8x128xf32>
    %174 = math.exp %173 : vector<8x128xf32>
    %cst_49 = arith.constant 1.000000e+00 : f32
    %175 = vector.broadcast %cst_49 : f32 to vector<8x128xf32>
    %176 = arith.addf %175, %174 : vector<8x128xf32>
    %177 = arith.divf %175, %176 : vector<8x128xf32>
    %178 = vector.extract_strided_slice %171 {offsets = [0, 128], sizes = [8, 128], strides = [1, 1]} : vector<8x512xf32> to vector<8x128xf32>
    %179 = arith.negf %178 : vector<8x128xf32>
    %180 = math.exp %179 : vector<8x128xf32>
    %cst_50 = arith.constant 1.000000e+00 : f32
    %181 = vector.broadcast %cst_50 : f32 to vector<8x128xf32>
    %182 = arith.addf %181, %180 : vector<8x128xf32>
    %183 = arith.divf %181, %182 : vector<8x128xf32>
    %184 = vector.extract_strided_slice %171 {offsets = [0, 256], sizes = [8, 128], strides = [1, 1]} : vector<8x512xf32> to vector<8x128xf32>
    %185 = math.tanh %184 : vector<8x128xf32>
    %186 = vector.extract_strided_slice %171 {offsets = [0, 384], sizes = [8, 128], strides = [1, 1]} : vector<8x512xf32> to vector<8x128xf32>
    %187 = arith.negf %186 : vector<8x128xf32>
    %188 = math.exp %187 : vector<8x128xf32>
    %cst_51 = arith.constant 1.000000e+00 : f32
    %189 = vector.broadcast %cst_51 : f32 to vector<8x128xf32>
    %190 = arith.addf %189, %188 : vector<8x128xf32>
    %191 = arith.divf %189, %190 : vector<8x128xf32>
    %192 = arith.mulf %183, %162 : vector<8x128xf32>
    %193 = arith.mulf %177, %185 : vector<8x128xf32>
    %194 = arith.addf %192, %193 : vector<8x128xf32>
    %195 = math.tanh %194 : vector<8x128xf32>
    %196 = arith.mulf %191, %195 : vector<8x128xf32>
    %c6_i32 = arith.constant 6 : i32
    %197 = arith.index_cast %c6_i32 : i32 to index
    %c0_52 = arith.constant 0 : index
    %c0_53 = arith.constant 0 : index
    %198 = vector.load %arg1[%197, %c0_52, %c0_53] : memref<8x8x512xf32, #tpu.memory_space<vmem>>, vector<1x8x512xf32>
    %199 = vector.shape_cast %198 : vector<1x8x512xf32> to vector<8x512xf32>
    %200 = arith.truncf %196 : vector<8x128xf32> to vector<8x128xbf16>
    %c0_54 = arith.constant 0 : index
    %c0_55 = arith.constant 0 : index
    %201 = vector.load %arg2[%c0_54, %c0_55] : memref<128x512xbf16, #tpu.memory_space<vmem>>, vector<128x512xbf16>
    %cst_56 = arith.constant dense<0.000000e+00> : vector<8x512xf32>
    %202 = tpu.matmul %200, %201, %cst_56 {dimension_numbers = #tpu.dot_dimension_numbers<[1], [0], [0], [1], [0, 0, 1, 1], [], []>} : vector<8x128xbf16>, vector<128x512xbf16>, vector<8x512xf32> -> vector<8x512xf32>
    %203 = arith.addf %199, %202 : vector<8x512xf32>
    %204 = vector.extract_strided_slice %203 {offsets = [0, 0], sizes = [8, 128], strides = [1, 1]} : vector<8x512xf32> to vector<8x128xf32>
    %205 = arith.negf %204 : vector<8x128xf32>
    %206 = math.exp %205 : vector<8x128xf32>
    %cst_57 = arith.constant 1.000000e+00 : f32
    %207 = vector.broadcast %cst_57 : f32 to vector<8x128xf32>
    %208 = arith.addf %207, %206 : vector<8x128xf32>
    %209 = arith.divf %207, %208 : vector<8x128xf32>
    %210 = vector.extract_strided_slice %203 {offsets = [0, 128], sizes = [8, 128], strides = [1, 1]} : vector<8x512xf32> to vector<8x128xf32>
    %211 = arith.negf %210 : vector<8x128xf32>
    %212 = math.exp %211 : vector<8x128xf32>
    %cst_58 = arith.constant 1.000000e+00 : f32
    %213 = vector.broadcast %cst_58 : f32 to vector<8x128xf32>
    %214 = arith.addf %213, %212 : vector<8x128xf32>
    %215 = arith.divf %213, %214 : vector<8x128xf32>
    %216 = vector.extract_strided_slice %203 {offsets = [0, 256], sizes = [8, 128], strides = [1, 1]} : vector<8x512xf32> to vector<8x128xf32>
    %217 = math.tanh %216 : vector<8x128xf32>
    %218 = vector.extract_strided_slice %203 {offsets = [0, 384], sizes = [8, 128], strides = [1, 1]} : vector<8x512xf32> to vector<8x128xf32>
    %219 = arith.negf %218 : vector<8x128xf32>
    %220 = math.exp %219 : vector<8x128xf32>
    %cst_59 = arith.constant 1.000000e+00 : f32
    %221 = vector.broadcast %cst_59 : f32 to vector<8x128xf32>
    %222 = arith.addf %221, %220 : vector<8x128xf32>
    %223 = arith.divf %221, %222 : vector<8x128xf32>
    %224 = arith.mulf %215, %194 : vector<8x128xf32>
    %225 = arith.mulf %209, %217 : vector<8x128xf32>
    %226 = arith.addf %224, %225 : vector<8x128xf32>
    %227 = math.tanh %226 : vector<8x128xf32>
    %228 = arith.mulf %223, %227 : vector<8x128xf32>
    %c7_i32 = arith.constant 7 : i32
    %229 = arith.index_cast %c7_i32 : i32 to index
    %c0_60 = arith.constant 0 : index
    %c0_61 = arith.constant 0 : index
    %230 = vector.load %arg1[%229, %c0_60, %c0_61] : memref<8x8x512xf32, #tpu.memory_space<vmem>>, vector<1x8x512xf32>
    %231 = vector.shape_cast %230 : vector<1x8x512xf32> to vector<8x512xf32>
    %232 = arith.truncf %228 : vector<8x128xf32> to vector<8x128xbf16>
    %c0_62 = arith.constant 0 : index
    %c0_63 = arith.constant 0 : index
    %233 = vector.load %arg2[%c0_62, %c0_63] : memref<128x512xbf16, #tpu.memory_space<vmem>>, vector<128x512xbf16>
    %cst_64 = arith.constant dense<0.000000e+00> : vector<8x512xf32>
    %234 = tpu.matmul %232, %233, %cst_64 {dimension_numbers = #tpu.dot_dimension_numbers<[1], [0], [0], [1], [0, 0, 1, 1], [], []>} : vector<8x128xbf16>, vector<128x512xbf16>, vector<8x512xf32> -> vector<8x512xf32>
    %235 = arith.addf %231, %234 : vector<8x512xf32>
    %236 = vector.extract_strided_slice %235 {offsets = [0, 0], sizes = [8, 128], strides = [1, 1]} : vector<8x512xf32> to vector<8x128xf32>
    %237 = arith.negf %236 : vector<8x128xf32>
    %238 = math.exp %237 : vector<8x128xf32>
    %cst_65 = arith.constant 1.000000e+00 : f32
    %239 = vector.broadcast %cst_65 : f32 to vector<8x128xf32>
    %240 = arith.addf %239, %238 : vector<8x128xf32>
    %241 = arith.divf %239, %240 : vector<8x128xf32>
    %242 = vector.extract_strided_slice %235 {offsets = [0, 128], sizes = [8, 128], strides = [1, 1]} : vector<8x512xf32> to vector<8x128xf32>
    %243 = arith.negf %242 : vector<8x128xf32>
    %244 = math.exp %243 : vector<8x128xf32>
    %cst_66 = arith.constant 1.000000e+00 : f32
    %245 = vector.broadcast %cst_66 : f32 to vector<8x128xf32>
    %246 = arith.addf %245, %244 : vector<8x128xf32>
    %247 = arith.divf %245, %246 : vector<8x128xf32>
    %248 = vector.extract_strided_slice %235 {offsets = [0, 256], sizes = [8, 128], strides = [1, 1]} : vector<8x512xf32> to vector<8x128xf32>
    %249 = math.tanh %248 : vector<8x128xf32>
    %250 = vector.extract_strided_slice %235 {offsets = [0, 384], sizes = [8, 128], strides = [1, 1]} : vector<8x512xf32> to vector<8x128xf32>
    %251 = arith.negf %250 : vector<8x128xf32>
    %252 = math.exp %251 : vector<8x128xf32>
    %cst_67 = arith.constant 1.000000e+00 : f32
    %253 = vector.broadcast %cst_67 : f32 to vector<8x128xf32>
    %254 = arith.addf %253, %252 : vector<8x128xf32>
    %255 = arith.divf %253, %254 : vector<8x128xf32>
    %256 = arith.mulf %247, %226 : vector<8x128xf32>
    %257 = arith.mulf %241, %249 : vector<8x128xf32>
    %258 = arith.addf %256, %257 : vector<8x128xf32>
    %259 = math.tanh %258 : vector<8x128xf32>
    %260 = arith.mulf %255, %259 : vector<8x128xf32>
    %c8_i32 = arith.constant 8 : i32
    %c0_68 = arith.constant 0 : index
    %c0_69 = arith.constant 0 : index
    %261 = vector.load %arg4[%c0_68, %c0_69] : memref<8x128xf32, #tpu.memory_space<vmem>>, vector<8x128xf32>
    tpu.vector_store %arg4[%c0_68, %c0_69], %260 {strides = array<i32>} : memref<8x128xf32, #tpu.memory_space<vmem>>, vector<8x128xf32>,
    %c0_70 = arith.constant 0 : index
    %c0_71 = arith.constant 0 : index
    %262 = vector.load %arg5[%c0_70, %c0_71] : memref<8x128xf32, #tpu.memory_space<vmem>>, vector<8x128xf32>
    tpu.vector_store %arg5[%c0_70, %c0_71], %258 {strides = array<i32>} : memref<8x128xf32, #tpu.memory_space<vmem>>, vector<8x128xf32>,
    %c1_i32_72 = arith.constant 1 : i32
    %263 = arith.cmpi eq, %arg0, %c1_i32_72 : i32
    %264 = arith.extui %263 : i1 to i32
    %c0_i32_73 = arith.constant 0 : i32
    %265 = arith.cmpi ne, %264, %c0_i32_73 : i32
    scf.if %265 {
      %c0_74 = arith.constant 0 : index
      %c0_75 = arith.constant 0 : index
      %266 = vector.load %arg3[%c0_74, %c0_75] : memref<8x128xf32, #tpu.memory_space<vmem>>, vector<8x128xf32>
      tpu.vector_store %arg3[%c0_74, %c0_75], %260 {strides = array<i32>} : memref<8x128xf32, #tpu.memory_space<vmem>>, vector<8x128xf32>,
    } else {
    }
    return
  }
  func.func @transform_0(%arg0: i32) -> (i32, i32, i32) {
    %c0_i32 = arith.constant 0 : i32
    %c0_i32_0 = arith.constant 0 : i32
    %c0_i32_1 = arith.constant 0 : i32
    return %arg0, %c0_i32, %c0_i32_0 : i32, i32, i32
  }
  func.func @transform_1(%arg0: i32) -> (i32, i32) {
    %c0_i32 = arith.constant 0 : i32
    %c0_i32_0 = arith.constant 0 : i32
    %c0_i32_1 = arith.constant 0 : i32
    return %c0_i32, %c0_i32_0 : i32, i32
  }
  func.func @transform_2(%arg0: i32) -> (i32, i32) {
    %c0_i32 = arith.constant 0 : i32
    %c0_i32_0 = arith.constant 0 : i32
    %c0_i32_1 = arith.constant 0 : i32
    return %c0_i32, %c0_i32_0 : i32, i32
  }
}

</mosaic_0001>

<llo_original>
// kernel: tpu_custom_call.1
$region0: #{tpu_custom_call.1}
  #allocation0 [shape = 'u32[]', space=smem, size = 0x4, offset = 0x4, fixed_abs, tag = 'smem constant byte address 0x4 - core index']
  #allocation1 [shape = 'u32[144,128]{1,0:T(1,128)}', space=vmem, size = 0x12000, scoped, tag = 'internal scratch']
  #allocation2 [shape = 'f32[8,128]{1,0:T(8,128)}', space=vmem, size = 0x1000, scoped, tag = 'scratch operand']
  #allocation3 [shape = 'f32[8,128]{1,0:T(8,128)}', space=vmem, size = 0x1000, scoped, tag = 'scratch operand']
  %s0 = inlined_call_operand.hbm [shape: f32[16,8,512], index: 0, kind: input, shape index: {}]
  %s1 = inlined_call_operand.hbm [shape: bf16[128,512], index: 1, kind: input, shape index: {}]
  %s2 = inlined_call_operand.hbm [shape: f32[8,128], index: 2, kind: output, shape index: {}]
  %s3 = sld [smem:[#allocation0]]
  $region57: #{tpu_custom_call.1} parent=0
    _
  %s5 = ssub.s32 1, %s3
  %s6 = scalar_select 0, %s5, %s3
  $region1: #{tpu_custom_call.1} parent=0
    #allocation4 [shape = 'u8[262144]{0}', space=vmem, size = 0x40000, scoped, tag = 'input window, operand 0']
    #allocation5 [shape = 's32[2]{0}', space=sflag, size = 0x8, scoped, tag = 'scoped memory for tpu_custom_call.1']
    #allocation6 [shape = 's32[2]{0}', space=sflag, size = 0x8, scoped, tag = 'scoped memory for tpu_custom_call.1']
    #allocation7 [shape = 'u8[131072]{0}', space=vmem, size = 0x20000, scoped, tag = 'input window, operand 1, single buffered']
    #allocation8 [shape = 's32[1]{0}', space=sflag, size = 0x4, scoped, tag = 'scoped memory for tpu_custom_call.1']
    #allocation9 [shape = 'u8[4096]{0}', space=vmem, size = 0x1000, scoped, tag = 'output window, operand 0, single buffered']
    %7 = vsyncpa [#allocation5], 0
    %s8 = scalar_lea.sflag [#allocation5], 1
    %9 = vsyncpa %s8, 0
    %10 = vsyncpa [#allocation8], 0
    %11 = vsyncpa [#allocation6], 0
    loop: start=0, step=1, limit=4
    $region2: #{tpu_custom_call.1} parent=1 // loop_pre_header
      _
    $region3: #{tpu_custom_call.1} parent=1 // loop_header
      %s13 = sphi 0, %s17
      %p14 = scmp.ge.s32.totalorder %s13, 4
      %s23 = sphi 0, %s25
      %s26 = sphi 0, %s23
      %s27 = sphi 0, %s26
      %s43 = sphi 0, %s27
      %s47 = sphi 0, %s47
      %s49 = sphi 0, %s47
      %s50 = sphi 0, %s49
      %s64 = sphi 0, %s50
      %s68 = sphi 0, %s68
      %s70 = sphi 0, %s68
      %s71 = sphi 0, %s70
      %s85 = sphi 0, %s71
    $region4: #{tpu_custom_call.1} parent=1 // loop_header_branch
      %16 = sbr.rel (%p14) target = $region8
    $region5: #{tpu_custom_call.1} parent=1 // loop_body
      %s18 = ssub.s32 %s13, 1
      %s19 = ssub.s32 %s13, 2
      %s20 = sadd.s32 %s13, 1
      %s21 = ssub.s32 %s13, %s20
      %p22 = scmp.eq.s32.totalorder %s21, 0
      %s24 = sadd.s32 %s23, 1
      %s25 = scalar_select %p22, %s23, %s24
      %p28 = pneg %p22
      %p29 = scmp.eq.s32.totalorder %s13, 1
      %p30 = por %p28, %p29
      %p31 = scmp.ne.s32.totalorder %s23, %s26
      %p32 = scmp.eq.s32.totalorder %s13, 0
      %p33 = por %p31, %p32
      %p34 = scmp.ne.s32.totalorder %s23, %s26
      %p35 = scmp.eq.s32.totalorder %s18, 1
      %p36 = por %p34, %p35
      %p37 = scmp.ne.s32.totalorder %s26, %s27
      %p38 = scmp.eq.s32.totalorder %s18, 0
      %p39 = por %p37, %p38
      %p40 = scmp.ne.s32.totalorder %s26, %s27
      %p41 = scmp.eq.s32.totalorder %s19, 1
      %p42 = por %p40, %p41
      %p44 = scmp.ne.s32.totalorder %s27, %s43
      %p45 = scmp.eq.s32.totalorder %s19, 0
      %p46 = por %p44, %p45
      %s48 = sadd.s32 %s47, 1
      %p51 = scmp.eq.s32.totalorder %s13, 1
      %p52 = scmp.ne.s32.totalorder %s47, %s49
      %p53 = scmp.eq.s32.totalorder %s13, 0
      %p54 = por %p52, %p53
      %p55 = scmp.ne.s32.totalorder %s47, %s49
      %p56 = scmp.eq.s32.totalorder %s18, 1
      %p57 = por %p55, %p56
      %p58 = scmp.ne.s32.totalorder %s49, %s50
      %p59 = scmp.eq.s32.totalorder %s18, 0
      %p60 = por %p58, %p59
      %p61 = scmp.ne.s32.totalorder %s49, %s50
      %p62 = scmp.eq.s32.totalorder %s19, 1
      %p63 = por %p61, %p62
      %p65 = scmp.ne.s32.totalorder %s50, %s64
      %p66 = scmp.eq.s32.totalorder %s19, 0
      %p67 = por %p65, %p66
      %s69 = sadd.s32 %s68, 1
      %p72 = scmp.eq.s32.totalorder %s13, 1
      %p73 = scmp.ne.s32.totalorder %s68, %s70
      %p74 = scmp.eq.s32.totalorder %s13, 0
      %p75 = por %p73, %p74
      %p76 = scmp.ne.s32.totalorder %s68, %s70
      %p77 = scmp.eq.s32.totalorder %s18, 1
      %p78 = por %p76, %p77
      %p79 = scmp.ne.s32.totalorder %s70, %s71
      %p80 = scmp.eq.s32.totalorder %s18, 0
      %p81 = por %p79, %p80
      %p82 = scmp.ne.s32.totalorder %s70, %s71
      %p83 = scmp.eq.s32.totalorder %s19, 1
      %p84 = por %p82, %p83
      %p86 = scmp.ne.s32.totalorder %s71, %s85
      %p87 = scmp.eq.s32.totalorder %s19, 0
      %p88 = por %p86, %p87
      %p89 = scmp.le.s32.totalorder 1, %s13
      %p90 = scmp.lt.s32.totalorder %s13, 3
      %p91 = pnand %p89, %p90
      %p92 = pneg %p91
      // Predicated region
      $region9: #{tpu_custom_call.1} parent=5 // pred_check
        _
      $region10: #{tpu_custom_call.1} parent=5 // pred_check_branch
        %94 = sbr.rel (%p91) target = $region12
      $region11: #{tpu_custom_call.1} parent=5 // pred_region
        %s95 = ssub.s32 %s13, 1
        // Predicated region
        $region13: #{tpu_custom_call.1} parent=11 // pred_check
          %p96 = pneg %p60
        $region14: #{tpu_custom_call.1} parent=11 // pred_check_branch
          %98 = sbr.rel (%p96) target = $region16
        $region15: #{tpu_custom_call.1} parent=11 // pred_region
          %s100 = ssub.s32 4096, 4096
          %101 = vsyncadd [#allocation8], %s100
          %s102 = sshll.u32 [#allocation7], 4
          %s103 = int_to_ptr.vmem [resolvable:$true] %s102
          %108 = dma.hbm_to_vmem [thread:$0]  %s1, 4096, %s103, [#allocation8], 256, 256, 16
        $region16: #{tpu_custom_call.1} parent=11 // pred_fallthru
          _
      $region12: #{tpu_custom_call.1} parent=5 // pred_fallthru
        _
      %p109 = scmp.lt.s32.totalorder %s13, 2
      // Predicated region
      $region17: #{tpu_custom_call.1} parent=5 // pred_check
        %p110 = pneg %p109
      $region18: #{tpu_custom_call.1} parent=5 // pred_check_branch
        %112 = sbr.rel (%p110) target = $region20
      $region19: #{tpu_custom_call.1} parent=5 // pred_region
        // Predicated region
        $region21: #{tpu_custom_call.1} parent=19 // pred_check
          %p113 = pneg %p33
        $region22: #{tpu_custom_call.1} parent=19 // pred_check_branch
          %115 = sbr.rel (%p113) target = $region24
        $region23: #{tpu_custom_call.1} parent=19 // pred_region
          %s116 = sand.u32 %s23, 1
          %s117 = scalar_lea.sflag [#allocation5], %s116
          %s118 = sand.u32 %s23, 1
          %s119 = smul.addr %s118, 256
          %s120 = scalar_lea.vmem [#allocation4], %s119
          %s121 = smul.u32 8, %s13
          %s123 = ssub.s32 4096, 4096
          %124 = vsyncadd %s117, %s123
          %s125 = smul.addr %s121, 4
          %s126 = smul.addr %s125, 128
          %s127 = scalar_lea.hbm %s0, %s126
          %s128 = sshll.u32 %s120, 4
          %s129 = int_to_ptr.vmem [resolvable:$true] %s128
          %134 = dma.hbm_to_vmem [thread:$0]  %s127, 4096, %s129, %s117, 512, 512, 32
        $region24: #{tpu_custom_call.1} parent=19 // pred_fallthru
          _
      $region20: #{tpu_custom_call.1} parent=5 // pred_fallthru
        _
      %p135 = scmp.le.s32.totalorder 1, %s13
      %p136 = scmp.lt.s32.totalorder %s13, 3
      %p137 = pnand %p135, %p136
      %p138 = pneg %p137
      // Predicated region
      $region25: #{tpu_custom_call.1} parent=5 // pred_check
        _
      $region26: #{tpu_custom_call.1} parent=5 // pred_check_branch
        %140 = sbr.rel (%p137) target = $region28
      $region27: #{tpu_custom_call.1} parent=5 // pred_region
        %s141 = ssub.s32 %s13, 1
        %s142 = sand.u32 %s26, 1
        %s143 = scalar_lea.sflag [#allocation5], %s142
        %s144 = sand.u32 %s26, 1
        %s145 = smul.addr %s144, 256
        %s146 = scalar_lea.vmem [#allocation4], %s145
        // Predicated region
        $region29: #{tpu_custom_call.1} parent=27 // pred_check
          %p147 = pneg %p39
        $region30: #{tpu_custom_call.1} parent=27 // pred_check_branch
          %149 = sbr.rel (%p147) target = $region32
        $region31: #{tpu_custom_call.1} parent=27 // pred_region
          %150 = dma.done %s143, 4096
        $region32: #{tpu_custom_call.1} parent=27 // pred_fallthru
          _
        // Predicated region
        $region33: #{tpu_custom_call.1} parent=27 // pred_check
          %p151 = pneg %p60
        $region34: #{tpu_custom_call.1} parent=27 // pred_check_branch
          %153 = sbr.rel (%p151) target = $region36
        $region35: #{tpu_custom_call.1} parent=27 // pred_region
          %154 = dma.done [#allocation8], 4096
        $region36: #{tpu_custom_call.1} parent=27 // pred_fallthru
          _
        %s155 = sand.u32 %s26, 1
        %s156 = scalar_lea.sflag [#allocation5], %s155
        %s157 = sand.u32 %s26, 1
        %s158 = smul.addr %s157, 256
        %s159 = scalar_lea.vmem [#allocation4], %s158
        %p160 = pneg %p39
        %p161 = pneg %p36
        %p162 = pneg %p60
        %p163 = pneg %p57
        %p164 = pneg %p81
        %p165 = pneg %p78
        %s166 = smul.u32 8, %s18
        %p168 = scmp.eq.s32.totalorder %s18, 0
        // Predicated region
        $region37: #{tpu_custom_call.1} parent=27 // pred_check
          %p169 = pneg %p168
        $region38: #{tpu_custom_call.1} parent=27 // pred_check_branch
          %171 = sbr.rel (%p169) target = $region40
        $region39: #{tpu_custom_call.1} parent=27 // pred_region
          %172 = vst [vmem:[#allocation2] sm:$0xff] 0.0
          %173 = vst [vmem:[#allocation3] sm:$0xff] 0.0
        $region40: #{tpu_custom_call.1} parent=27 // pred_fallthru
          _
        %v174 = vld [vmem:[#allocation2] sm:$0xff]
        %v175 = vld [vmem:[#allocation3] sm:$0xff]
        %v176 = vld [vmem:[%s146] sm:$0xff]
        %v177 = vld [vmem:[%s146 + $0x8] sm:$0xff]
        %v178 = vld [vmem:[%s146 + $0x10] sm:$0xff]
        %v179 = vld [vmem:[%s146 + $0x18] sm:$0xff]
        %v180 = vpack.c.bf16 %v174, %v174
        %v181 = vld [vmem:[#allocation7] sm:$0xff]
        %v182 = vld [vmem:[#allocation7 + $0x8] sm:$0xff]
        %v183 = vld [vmem:[#allocation7 + $0x10] sm:$0xff]
        %v184 = vld [vmem:[#allocation7 + $0x18] sm:$0xff]
        %v185 = vld [vmem:[#allocation7 + $0x20] sm:$0xff]
        %v186 = vld [vmem:[#allocation7 + $0x28] sm:$0xff]
        %v187 = vld [vmem:[#allocation7 + $0x30] sm:$0xff]
        %v188 = vld [vmem:[#allocation7 + $0x38] sm:$0xff]
        %v189 = vld [vmem:[#allocation7 + $0x40] sm:$0xff]
        %v190 = vld [vmem:[#allocation7 + $0x48] sm:$0xff]
        %v191 = vld [vmem:[#allocation7 + $0x50] sm:$0xff]
        %v192 = vld [vmem:[#allocation7 + $0x58] sm:$0xff]
        %v193 = vld [vmem:[#allocation7 + $0x60] sm:$0xff]
        %v194 = vld [vmem:[#allocation7 + $0x68] sm:$0xff]
        %v195 = vld [vmem:[#allocation7 + $0x70] sm:$0xff]
        %v196 = vld [vmem:[#allocation7 + $0x78] sm:$0xff]
        %v197 = vld [vmem:[#allocation7 + $0x80] sm:$0xff]
        %v198 = vld [vmem:[#allocation7 + $0x88] sm:$0xff]
        %v199 = vld [vmem:[#allocation7 + $0x90] sm:$0xff]
        %v200 = vld [vmem:[#allocation7 + $0x98] sm:$0xff]
        %v201 = vld [vmem:[#allocation7 + $0xa0] sm:$0xff]
        %v202 = vld [vmem:[#allocation7 + $0xa8] sm:$0xff]
        %v203 = vld [vmem:[#allocation7 + $0xb0] sm:$0xff]
        %v204 = vld [vmem:[#allocation7 + $0xb8] sm:$0xff]
        %v205 = vld [vmem:[#allocation7 + $0xc0] sm:$0xff]
        %v206 = vld [vmem:[#allocation7 + $0xc8] sm:$0xff]
        %v207 = vld [vmem:[#allocation7 + $0xd0] sm:$0xff]
        %v208 = vld [vmem:[#allocation7 + $0xd8] sm:$0xff]
        %v209 = vld [vmem:[#allocation7 + $0xe0] sm:$0xff]
        %v210 = vld [vmem:[#allocation7 + $0xe8] sm:$0xff]
        %v211 = vld [vmem:[#allocation7 + $0xf0] sm:$0xff]
        %v212 = vld [vmem:[#allocation7 + $0xf8] sm:$0xff]
        %v245 = vunpack.c.l.b16 %v181
        %v246 = vunpack.c.h.b16 %v181
        %v247 = vunpack.c.l.b16 %v182
        %v248 = vunpack.c.h.b16 %v182
        %v249 = vunpack.c.l.b16 %v183
        %v250 = vunpack.c.h.b16 %v183
        %v251 = vunpack.c.l.b16 %v184
        %v252 = vunpack.c.h.b16 %v184
        %v253 = vunpack.c.l.b16 %v185
        %v254 = vunpack.c.h.b16 %v185
        %v255 = vunpack.c.l.b16 %v186
        %v256 = vunpack.c.h.b16 %v186
        %v257 = vunpack.c.l.b16 %v187
        %v258 = vunpack.c.h.b16 %v187
        %v259 = vunpack.c.l.b16 %v188
        %v260 = vunpack.c.h.b16 %v188
        %v261 = vunpack.c.l.b16 %v189
        %v262 = vunpack.c.h.b16 %v189
        %v263 = vunpack.c.l.b16 %v190
        %v264 = vunpack.c.h.b16 %v190
        %v265 = vunpack.c.l.b16 %v191
        %v266 = vunpack.c.h.b16 %v191
        %v267 = vunpack.c.l.b16 %v192
        %v268 = vunpack.c.h.b16 %v192
        %v269 = vunpack.c.l.b16 %v193
        %v270 = vunpack.c.h.b16 %v193
        %v271 = vunpack.c.l.b16 %v194
        %v272 = vunpack.c.h.b16 %v194
        %v273 = vunpack.c.l.b16 %v195
        %v274 = vunpack.c.h.b16 %v195
        %v275 = vunpack.c.l.b16 %v196
        %v276 = vunpack.c.h.b16 %v196
        %v277 = vunpack.c.l.b16 %v197
        %v278 = vunpack.c.h.b16 %v197
        %v279 = vunpack.c.l.b16 %v198
        %v280 = vunpack.c.h.b16 %v198
        %v281 = vunpack.c.l.b16 %v199
        %v282 = vunpack.c.h.b16 %v199
        %v283 = vunpack.c.l.b16 %v200
        %v284 = vunpack.c.h.b16 %v200
        %v285 = vunpack.c.l.b16 %v201
        %v286 = vunpack.c.h.b16 %v201
        %v287 = vunpack.c.l.b16 %v202
        %v288 = vunpack.c.h.b16 %v202
        %v289 = vunpack.c.l.b16 %v203
        %v290 = vunpack.c.h.b16 %v203
        %v291 = vunpack.c.l.b16 %v204
        %v292 = vunpack.c.h.b16 %v204
        %v293 = vunpack.c.l.b16 %v205
        %v294 = vunpack.c.h.b16 %v205
        %v295 = vunpack.c.l.b16 %v206
        %v296 = vunpack.c.h.b16 %v206
        %v297 = vunpack.c.l.b16 %v207
        %v298 = vunpack.c.h.b16 %v207
        %v299 = vunpack.c.l.b16 %v208
        %v300 = vunpack.c.h.b16 %v208
        %v301 = vunpack.c.l.b16 %v209
        %v302 = vunpack.c.h.b16 %v209
        %v303 = vunpack.c.l.b16 %v210
        %v304 = vunpack.c.h.b16 %v210
        %v305 = vunpack.c.l.b16 %v211
        %v306 = vunpack.c.h.b16 %v211
        %v307 = vunpack.c.l.b16 %v212
        %v308 = vunpack.c.h.b16 %v212
        %v309 = vpack.c.b16 %v249, %v245
        %v310 = vpack.c.b16 %v250, %v246
        %v311 = vpack.c.b16 %v251, %v247
        %v312 = vpack.c.b16 %v252, %v248
        %v313 = vpack.c.b16 %v257, %v253
        %v314 = vpack.c.b16 %v258, %v254
        %v315 = vpack.c.b16 %v259, %v255
        %v316 = vpack.c.b16 %v260, %v256
        %v317 = vpack.c.b16 %v265, %v261
        %v318 = vpack.c.b16 %v266, %v262
        %v319 = vpack.c.b16 %v267, %v263
        %v320 = vpack.c.b16 %v268, %v264
        %v321 = vpack.c.b16 %v273, %v269
        %v322 = vpack.c.b16 %v274, %v270
        %v323 = vpack.c.b16 %v275, %v271
        %v324 = vpack.c.b16 %v276, %v272
        %v325 = vpack.c.b16 %v281, %v277
        %v326 = vpack.c.b16 %v282, %v278
        %v327 = vpack.c.b16 %v283, %v279
        %v328 = vpack.c.b16 %v284, %v280
        %v329 = vpack.c.b16 %v289, %v285
        %v330 = vpack.c.b16 %v290, %v286
        %v331 = vpack.c.b16 %v291, %v287
        %v332 = vpack.c.b16 %v292, %v288
        %v333 = vpack.c.b16 %v297, %v293
        %v334 = vpack.c.b16 %v298, %v294
        %v335 = vpack.c.b16 %v299, %v295
        %v336 = vpack.c.b16 %v300, %v296
        %v337 = vpack.c.b16 %v305, %v301
        %v338 = vpack.c.b16 %v306, %v302
        %v339 = vpack.c.b16 %v307, %v303
        %v340 = vpack.c.b16 %v308, %v304
        %373 = vmatprep.subr.bf16.mxu0 %v338
        %374 = vmatpush1.bf16.msra.mxu0 %v337
        %375 = vmatprep.subr.bf16.mxu0 %v334
        %376 = vmatpush1.bf16.msra.mxu0 %v333
        %377 = vmatprep.subr.bf16.mxu0 %v330
        %378 = vmatpush1.bf16.msra.mxu0 %v329
        %379 = vmatprep.subr.bf16.mxu0 %v326
        %380 = vmatpush1.bf16.msra.mxu0 %v325
        %381 = vmatprep.subr.bf16.mxu0 %v322
        %382 = vmatpush1.bf16.msra.mxu0 %v321
        %383 = vmatprep.subr.bf16.mxu0 %v318
        %384 = vmatpush1.bf16.msra.mxu0 %v317
        %385 = vmatprep.subr.bf16.mxu0 %v314
        %386 = vmatpush1.bf16.msra.mxu0 %v313
        %387 = vmatprep.subr.bf16.mxu0 %v310
        %388 = vmatpush1.bf16.msra.mxu0 %v309
        %389 = vmatprep.subr.bf16.mxu0 0
        %390 = vmatpush2.bf16.msra.mxu0 0
        %391 = vmatprep.subr.bf16.mxu0 0
        %392 = vmatpush2.bf16.msra.mxu0 0
        %393 = vmatprep.subr.bf16.mxu0 0
        %394 = vmatpush2.bf16.msra.mxu0 0
        %395 = vmatprep.subr.bf16.mxu0 0
        %396 = vmatpush2.bf16.msra.mxu0 0
        %397 = vmatprep.subr.bf16.mxu0 0
        %398 = vmatpush2.bf16.msra.mxu0 0
        %399 = vmatprep.subr.bf16.mxu0 0
        %400 = vmatpush2.bf16.msra.mxu0 0
        %401 = vmatprep.subr.bf16.mxu0 0
        %402 = vmatpush2.bf16.msra.mxu0 0
        %403 = vmatprep.subr.bf16.mxu0 0
        %404 = vmatpush2.bf16.msra.mxu0 0
        %405 = vmatprep.mubr.bf16.mxu0 0
        %406 = vmatmul.mubr.bf16.gmra.mxu0 %v180
        %v407 = vpop.f32.mrf.mxu0
        %v408 = vadd.f32 0.0, %v407
        %v409 = vpop.f32.mrf.mxu0
        %v410 = vadd.f32 0.0, %v409
        %v411 = vpop.f32.mrf.mxu0
        %v412 = vpop.f32.mrf.mxu0
        %413 = vdwg.mxu0
        %414 = vmatprep.subr.bf16.mxu0 %v340
        %415 = vmatpush1.bf16.msra.mxu0 %v339
        %416 = vmatprep.subr.bf16.mxu0 %v336
        %417 = vmatpush1.bf16.msra.mxu0 %v335
        %418 = vmatprep.subr.bf16.mxu0 %v332
        %419 = vmatpush1.bf16.msra.mxu0 %v331
        %420 = vmatprep.subr.bf16.mxu0 %v328
        %421 = vmatpush1.bf16.msra.mxu0 %v327
        %422 = vmatprep.subr.bf16.mxu0 %v324
        %423 = vmatpush1.bf16.msra.mxu0 %v323
        %424 = vmatprep.subr.bf16.mxu0 %v320
        %425 = vmatpush1.bf16.msra.mxu0 %v319
        %426 = vmatprep.subr.bf16.mxu0 %v316
        %427 = vmatpush1.bf16.msra.mxu0 %v315
        %428 = vmatprep.subr.bf16.mxu0 %v312
        %429 = vmatpush1.bf16.msra.mxu0 %v311
        %430 = vmatprep.subr.bf16.mxu0 0
        %431 = vmatpush2.bf16.msra.mxu0 0
        %432 = vmatprep.subr.bf16.mxu0 0
        %433 = vmatpush2.bf16.msra.mxu0 0
        %434 = vmatprep.subr.bf16.mxu0 0
        %435 = vmatpush2.bf16.msra.mxu0 0
        %436 = vmatprep.subr.bf16.mxu0 0
        %437 = vmatpush2.bf16.msra.mxu0 0
        %438 = vmatprep.subr.bf16.mxu0 0
        %439 = vmatpush2.bf16.msra.mxu0 0
        %440 = vmatprep.subr.bf16.mxu0 0
        %441 = vmatpush2.bf16.msra.mxu0 0
        %442 = vmatprep.subr.bf16.mxu0 0
        %443 = vmatpush2.bf16.msra.mxu0 0
        %444 = vmatprep.subr.bf16.mxu0 0
        %445 = vmatpush2.bf16.msra.mxu0 0
        %446 = vmatprep.mubr.bf16.mxu0 0
        %447 = vmatmul.mubr.bf16.gmra.mxu0 %v180
        %v448 = vpop.f32.mrf.mxu0
        %v449 = vadd.f32 0.0, %v448
        %v450 = vpop.f32.mrf.mxu0
        %v451 = vadd.f32 0.0, %v450
        %v452 = vpop.f32.mrf.mxu0
        %v453 = vpop.f32.mrf.mxu0
        %454 = vdwg.mxu0
        %v455 = vadd.f32 %v176, %v408
        %v456 = vadd.f32 %v177, %v410
        %v457 = vadd.f32 %v178, %v449
        %v458 = vadd.f32 %v179, %v451
        %v459 = vxor.u32 %v455, 2147483648
        %v460 = vmul.f32 %v459, 1.442695
        %v461 = vpow.pop %v460
        %v462 = vadd.f32 %v461, 1.0
        %v463 = vrcp.pop %v462
        %v464 = vmul.f32 1.0, %v463
        %v465 = vxor.u32 %v456, 2147483648
        %v466 = vmul.f32 %v465, 1.442695
        %v467 = vpow.pop %v466
        %v468 = vadd.f32 %v467, 1.0
        %v469 = vrcp.pop %v468
        %v470 = vmul.f32 1.0, %v469
        %v471 = vtanh.pop %v457
        %v472 = vxor.u32 %v458, 2147483648
        %v473 = vmul.f32 %v472, 1.442695
        %v474 = vpow.pop %v473
        %v475 = vadd.f32 %v474, 1.0
        %v476 = vrcp.pop %v475
        %v477 = vmul.f32 1.0, %v476
        %v478 = vmul.f32 %v470, %v175
        %v479 = vmul.f32 %v464, %v471
        %v480 = vadd.f32 %v478, %v479
        %v481 = vtanh.pop %v480
        %v482 = vmul.f32 %v477, %v481
        %s483 = scalar_lea.vmem %s146, 32 [#allocation4]
        %v484 = vld [vmem:[%s483] sm:$0xff]
        %v485 = vld [vmem:[%s483 + $0x8] sm:$0xff]
        %v486 = vld [vmem:[%s483 + $0x10] sm:$0xff]
        %v487 = vld [vmem:[%s483 + $0x18] sm:$0xff]
        %v488 = vpack.c.bf16 %v482, %v482
        %489 = vmatprep.subr.bf16.mxu0 %v338
        %490 = vmatpush1.bf16.msra.mxu0 %v337
        %491 = vmatprep.subr.bf16.mxu0 %v334
        %492 = vmatpush1.bf16.msra.mxu0 %v333
        %493 = vmatprep.subr.bf16.mxu0 %v330
        %494 = vmatpush1.bf16.msra.mxu0 %v329
        %495 = vmatprep.subr.bf16.mxu0 %v326
        %496 = vmatpush1.bf16.msra.mxu0 %v325
        %497 = vmatprep.subr.bf16.mxu0 %v322
        %498 = vmatpush1.bf16.msra.mxu0 %v321
        %499 = vmatprep.subr.bf16.mxu0 %v318
        %500 = vmatpush1.bf16.msra.mxu0 %v317
        %501 = vmatprep.subr.bf16.mxu0 %v314
        %502 = vmatpush1.bf16.msra.mxu0 %v313
        %503 = vmatprep.subr.bf16.mxu0 %v310
        %504 = vmatpush1.bf16.msra.mxu0 %v309
        %505 = vmatprep.subr.bf16.mxu0 0
        %506 = vmatpush2.bf16.msra.mxu0 0
        %507 = vmatprep.subr.bf16.mxu0 0
        %508 = vmatpush2.bf16.msra.mxu0 0
        %509 = vmatprep.subr.bf16.mxu0 0
        %510 = vmatpush2.bf16.msra.mxu0 0
        %511 = vmatprep.subr.bf16.mxu0 0
        %512 = vmatpush2.bf16.msra.mxu0 0
        %513 = vmatprep.subr.bf16.mxu0 0
        %514 = vmatpush2.bf16.msra.mxu0 0
        %515 = vmatprep.subr.bf16.mxu0 0
        %516 = vmatpush2.bf16.msra.mxu0 0
        %517 = vmatprep.subr.bf16.mxu0 0
        %518 = vmatpush2.bf16.msra.mxu0 0
        %519 = vmatprep.subr.bf16.mxu0 0
        %520 = vmatpush2.bf16.msra.mxu0 0
        %521 = vmatprep.mubr.bf16.mxu0 0
        %522 = vmatmul.mubr.bf16.gmra.mxu0 %v488
        %v523 = vpop.f32.mrf.mxu0
        %v524 = vadd.f32 0.0, %v523
        %v525 = vpop.f32.mrf.mxu0
        %v526 = vadd.f32 0.0, %v525
        %v527 = vpop.f32.mrf.mxu0
        %v528 = vpop.f32.mrf.mxu0
        %529 = vdwg.mxu0
        %530 = vmatprep.subr.bf16.mxu0 %v340
        %531 = vmatpush1.bf16.msra.mxu0 %v339
        %532 = vmatprep.subr.bf16.mxu0 %v336
        %533 = vmatpush1.bf16.msra.mxu0 %v335
        %534 = vmatprep.subr.bf16.mxu0 %v332
        %535 = vmatpush1.bf16.msra.mxu0 %v331
        %536 = vmatprep.subr.bf16.mxu0 %v328
        %537 = vmatpush1.bf16.msra.mxu0 %v327
        %538 = vmatprep.subr.bf16.mxu0 %v324
        %539 = vmatpush1.bf16.msra.mxu0 %v323
        %540 = vmatprep.subr.bf16.mxu0 %v320
        %541 = vmatpush1.bf16.msra.mxu0 %v319
        %542 = vmatprep.subr.bf16.mxu0 %v316
        %543 = vmatpush1.bf16.msra.mxu0 %v315
        %544 = vmatprep.subr.bf16.mxu0 %v312
        %545 = vmatpush1.bf16.msra.mxu0 %v311
        %546 = vmatprep.subr.bf16.mxu0 0
        %547 = vmatpush2.bf16.msra.mxu0 0
        %548 = vmatprep.subr.bf16.mxu0 0
        %549 = vmatpush2.bf16.msra.mxu0 0
        %550 = vmatprep.subr.bf16.mxu0 0
        %551 = vmatpush2.bf16.msra.mxu0 0
        %552 = vmatprep.subr.bf16.mxu0 0
        %553 = vmatpush2.bf16.msra.mxu0 0
        %554 = vmatprep.subr.bf16.mxu0 0
        %555 = vmatpush2.bf16.msra.mxu0 0
        %556 = vmatprep.subr.bf16.mxu0 0
        %557 = vmatpush2.bf16.msra.mxu0 0
        %558 = vmatprep.subr.bf16.mxu0 0
        %559 = vmatpush2.bf16.msra.mxu0 0
        %560 = vmatprep.subr.bf16.mxu0 0
        %561 = vmatpush2.bf16.msra.mxu0 0
        %562 = vmatprep.mubr.bf16.mxu0 0
        %563 = vmatmul.mubr.bf16.gmra.mxu0 %v488
        %v564 = vpop.f32.mrf.mxu0
        %v565 = vadd.f32 0.0, %v564
        %v566 = vpop.f32.mrf.mxu0
        %v567 = vadd.f32 0.0, %v566
        %v568 = vpop.f32.mrf.mxu0
        %v569 = vpop.f32.mrf.mxu0
        %570 = vdwg.mxu0
        %v571 = vadd.f32 %v484, %v524
        %v572 = vadd.f32 %v485, %v526
        %v573 = vadd.f32 %v486, %v565
        %v574 = vadd.f32 %v487, %v567
        %v575 = vxor.u32 %v571, 2147483648
        %v576 = vmul.f32 %v575, 1.442695
        %v577 = vpow.pop %v576
        %v578 = vadd.f32 %v577, 1.0
        %v579 = vrcp.pop %v578
        %v580 = vmul.f32 1.0, %v579
        %v581 = vxor.u32 %v572, 2147483648
        %v582 = vmul.f32 %v581, 1.442695
        %v583 = vpow.pop %v582
        %v584 = vadd.f32 %v583, 1.0
        %v585 = vrcp.pop %v584
        %v586 = vmul.f32 1.0, %v585
        %v587 = vtanh.pop %v573
        %v588 = vxor.u32 %v574, 2147483648
        %v589 = vmul.f32 %v588, 1.442695
        %v590 = vpow.pop %v589
        %v591 = vadd.f32 %v590, 1.0
        %v592 = vrcp.pop %v591
        %v593 = vmul.f32 1.0, %v592
        %v594 = vmul.f32 %v586, %v480
        %v595 = vmul.f32 %v580, %v587
        %v596 = vadd.f32 %v594, %v595
        %v597 = vtanh.pop %v596
        %v598 = vmul.f32 %v593, %v597
        %s599 = scalar_lea.vmem %s146, 64 [#allocation4]
        %v600 = vld [vmem:[%s599] sm:$0xff]
        %v601 = vld [vmem:[%s599 + $0x8] sm:$0xff]
        %v602 = vld [vmem:[%s599 + $0x10] sm:$0xff]
        %v603 = vld [vmem:[%s599 + $0x18] sm:$0xff]
        %v604 = vpack.c.bf16 %v598, %v598
        %605 = vmatprep.subr.bf16.mxu0 %v338
        %606 = vmatpush1.bf16.msra.mxu0 %v337
        %607 = vmatprep.subr.bf16.mxu0 %v334
        %608 = vmatpush1.bf16.msra.mxu0 %v333
        %609 = vmatprep.subr.bf16.mxu0 %v330
        %610 = vmatpush1.bf16.msra.mxu0 %v329
        %611 = vmatprep.subr.bf16.mxu0 %v326
        %612 = vmatpush1.bf16.msra.mxu0 %v325
        %613 = vmatprep.subr.bf16.mxu0 %v322
        %614 = vmatpush1.bf16.msra.mxu0 %v321
        %615 = vmatprep.subr.bf16.mxu0 %v318
        %616 = vmatpush1.bf16.msra.mxu0 %v317
        %617 = vmatprep.subr.bf16.mxu0 %v314
        %618 = vmatpush1.bf16.msra.mxu0 %v313
        %619 = vmatprep.subr.bf16.mxu0 %v310
        %620 = vmatpush1.bf16.msra.mxu0 %v309
        %621 = vmatprep.subr.bf16.mxu0 0
        %622 = vmatpush2.bf16.msra.mxu0 0
        %623 = vmatprep.subr.bf16.mxu0 0
        %624 = vmatpush2.bf16.msra.mxu0 0
        %625 = vmatprep.subr.bf16.mxu0 0
        %626 = vmatpush2.bf16.msra.mxu0 0
        %627 = vmatprep.subr.bf16.mxu0 0
        %628 = vmatpush2.bf16.msra.mxu0 0
        %629 = vmatprep.subr.bf16.mxu0 0
        %630 = vmatpush2.bf16.msra.mxu0 0
        %631 = vmatprep.subr.bf16.mxu0 0
        %632 = vmatpush2.bf16.msra.mxu0 0
        %633 = vmatprep.subr.bf16.mxu0 0
        %634 = vmatpush2.bf16.msra.mxu0 0
        %635 = vmatprep.subr.bf16.mxu0 0
        %636 = vmatpush2.bf16.msra.mxu0 0
        %637 = vmatprep.mubr.bf16.mxu0 0
        %638 = vmatmul.mubr.bf16.gmra.mxu0 %v604
        %v639 = vpop.f32.mrf.mxu0
        %v640 = vadd.f32 0.0, %v639
        %v641 = vpop.f32.mrf.mxu0
        %v642 = vadd.f32 0.0, %v641
        %v643 = vpop.f32.mrf.mxu0
        %v644 = vpop.f32.mrf.mxu0
        %645 = vdwg.mxu0
        %646 = vmatprep.subr.bf16.mxu0 %v340
        %647 = vmatpush1.bf16.msra.mxu0 %v339
        %648 = vmatprep.subr.bf16.mxu0 %v336
        %649 = vmatpush1.bf16.msra.mxu0 %v335
        %650 = vmatprep.subr.bf16.mxu0 %v332
        %651 = vmatpush1.bf16.msra.mxu0 %v331
        %652 = vmatprep.subr.bf16.mxu0 %v328
        %653 = vmatpush1.bf16.msra.mxu0 %v327
        %654 = vmatprep.subr.bf16.mxu0 %v324
        %655 = vmatpush1.bf16.msra.mxu0 %v323
        %656 = vmatprep.subr.bf16.mxu0 %v320
        %657 = vmatpush1.bf16.msra.mxu0 %v319
        %658 = vmatprep.subr.bf16.mxu0 %v316
        %659 = vmatpush1.bf16.msra.mxu0 %v315
        %660 = vmatprep.subr.bf16.mxu0 %v312
        %661 = vmatpush1.bf16.msra.mxu0 %v311
        %662 = vmatprep.subr.bf16.mxu0 0
        %663 = vmatpush2.bf16.msra.mxu0 0
        %664 = vmatprep.subr.bf16.mxu0 0
        %665 = vmatpush2.bf16.msra.mxu0 0
        %666 = vmatprep.subr.bf16.mxu0 0
        %667 = vmatpush2.bf16.msra.mxu0 0
        %668 = vmatprep.subr.bf16.mxu0 0
        %669 = vmatpush2.bf16.msra.mxu0 0
        %670 = vmatprep.subr.bf16.mxu0 0
        %671 = vmatpush2.bf16.msra.mxu0 0
        %672 = vmatprep.subr.bf16.mxu0 0
        %673 = vmatpush2.bf16.msra.mxu0 0
        %674 = vmatprep.subr.bf16.mxu0 0
        %675 = vmatpush2.bf16.msra.mxu0 0
        %676 = vmatprep.subr.bf16.mxu0 0
        %677 = vmatpush2.bf16.msra.mxu0 0
        %678 = vmatprep.mubr.bf16.mxu0 0
        %679 = vmatmul.mubr.bf16.gmra.mxu0 %v604
        %v680 = vpop.f32.mrf.mxu0
        %v681 = vadd.f32 0.0, %v680
        %v682 = vpop.f32.mrf.mxu0
        %v683 = vadd.f32 0.0, %v682
        %v684 = vpop.f32.mrf.mxu0
        %v685 = vpop.f32.mrf.mxu0
        %686 = vdwg.mxu0
        %v687 = vadd.f32 %v600, %v640
        %v688 = vadd.f32 %v601, %v642
        %v689 = vadd.f32 %v602, %v681
        %v690 = vadd.f32 %v603, %v683
        %v691 = vxor.u32 %v687, 2147483648
        %v692 = vmul.f32 %v691, 1.442695
        %v693 = vpow.pop %v692
        %v694 = vadd.f32 %v693, 1.0
        %v695 = vrcp.pop %v694
        %v696 = vmul.f32 1.0, %v695
        %v697 = vxor.u32 %v688, 2147483648
        %v698 = vmul.f32 %v697, 1.442695
        %v699 = vpow.pop %v698
        %v700 = vadd.f32 %v699, 1.0
        %v701 = vrcp.pop %v700
        %v702 = vmul.f32 1.0, %v701
        %v703 = vtanh.pop %v689
        %v704 = vxor.u32 %v690, 2147483648
        %v705 = vmul.f32 %v704, 1.442695
        %v706 = vpow.pop %v705
        %v707 = vadd.f32 %v706, 1.0
        %v708 = vrcp.pop %v707
        %v709 = vmul.f32 1.0, %v708
        %v710 = vmul.f32 %v702, %v596
        %v711 = vmul.f32 %v696, %v703
        %v712 = vadd.f32 %v710, %v711
        %v713 = vtanh.pop %v712
        %v714 = vmul.f32 %v709, %v713
        %s715 = scalar_lea.vmem %s146, 96 [#allocation4]
        %v716 = vld [vmem:[%s715] sm:$0xff]
        %v717 = vld [vmem:[%s715 + $0x8] sm:$0xff]
        %v718 = vld [vmem:[%s715 + $0x10] sm:$0xff]
        %v719 = vld [vmem:[%s715 + $0x18] sm:$0xff]
        %v720 = vpack.c.bf16 %v714, %v714
        %721 = vmatprep.subr.bf16.mxu0 %v338
        %722 = vmatpush1.bf16.msra.mxu0 %v337
        %723 = vmatprep.subr.bf16.mxu0 %v334
        %724 = vmatpush1.bf16.msra.mxu0 %v333
        %725 = vmatprep.subr.bf16.mxu0 %v330
        %726 = vmatpush1.bf16.msra.mxu0 %v329
        %727 = vmatprep.subr.bf16.mxu0 %v326
        %728 = vmatpush1.bf16.msra.mxu0 %v325
        %729 = vmatprep.subr.bf16.mxu0 %v322
        %730 = vmatpush1.bf16.msra.mxu0 %v321
        %731 = vmatprep.subr.bf16.mxu0 %v318
        %732 = vmatpush1.bf16.msra.mxu0 %v317
        %733 = vmatprep.subr.bf16.mxu0 %v314
        %734 = vmatpush1.bf16.msra.mxu0 %v313
        %735 = vmatprep.subr.bf16.mxu0 %v310
        %736 = vmatpush1.bf16.msra.mxu0 %v309
        %737 = vmatprep.subr.bf16.mxu0 0
        %738 = vmatpush2.bf16.msra.mxu0 0
        %739 = vmatprep.subr.bf16.mxu0 0
        %740 = vmatpush2.bf16.msra.mxu0 0
        %741 = vmatprep.subr.bf16.mxu0 0
        %742 = vmatpush2.bf16.msra.mxu0 0
        %743 = vmatprep.subr.bf16.mxu0 0
        %744 = vmatpush2.bf16.msra.mxu0 0
        %745 = vmatprep.subr.bf16.mxu0 0
        %746 = vmatpush2.bf16.msra.mxu0 0
        %747 = vmatprep.subr.bf16.mxu0 0
        %748 = vmatpush2.bf16.msra.mxu0 0
        %749 = vmatprep.subr.bf16.mxu0 0
        %750 = vmatpush2.bf16.msra.mxu0 0
        %751 = vmatprep.subr.bf16.mxu0 0
        %752 = vmatpush2.bf16.msra.mxu0 0
        %753 = vmatprep.mubr.bf16.mxu0 0
        %754 = vmatmul.mubr.bf16.gmra.mxu0 %v720
        %v755 = vpop.f32.mrf.mxu0
        %v756 = vadd.f32 0.0, %v755
        %v757 = vpop.f32.mrf.mxu0
        %v758 = vadd.f32 0.0, %v757
        %v759 = vpop.f32.mrf.mxu0
        %v760 = vpop.f32.mrf.mxu0
        %761 = vdwg.mxu0
        %762 = vmatprep.subr.bf16.mxu0 %v340
        %763 = vmatpush1.bf16.msra.mxu0 %v339
        %764 = vmatprep.subr.bf16.mxu0 %v336
        %765 = vmatpush1.bf16.msra.mxu0 %v335
        %766 = vmatprep.subr.bf16.mxu0 %v332
        %767 = vmatpush1.bf16.msra.mxu0 %v331
        %768 = vmatprep.subr.bf16.mxu0 %v328
        %769 = vmatpush1.bf16.msra.mxu0 %v327
        %770 = vmatprep.subr.bf16.mxu0 %v324
        %771 = vmatpush1.bf16.msra.mxu0 %v323
        %772 = vmatprep.subr.bf16.mxu0 %v320
        %773 = vmatpush1.bf16.msra.mxu0 %v319
        %774 = vmatprep.subr.bf16.mxu0 %v316
        %775 = vmatpush1.bf16.msra.mxu0 %v315
        %776 = vmatprep.subr.bf16.mxu0 %v312
        %777 = vmatpush1.bf16.msra.mxu0 %v311
        %778 = vmatprep.subr.bf16.mxu0 0
        %779 = vmatpush2.bf16.msra.mxu0 0
        %780 = vmatprep.subr.bf16.mxu0 0
        %781 = vmatpush2.bf16.msra.mxu0 0
        %782 = vmatprep.subr.bf16.mxu0 0
        %783 = vmatpush2.bf16.msra.mxu0 0
        %784 = vmatprep.subr.bf16.mxu0 0
        %785 = vmatpush2.bf16.msra.mxu0 0
        %786 = vmatprep.subr.bf16.mxu0 0
        %787 = vmatpush2.bf16.msra.mxu0 0
        %788 = vmatprep.subr.bf16.mxu0 0
        %789 = vmatpush2.bf16.msra.mxu0 0
        %790 = vmatprep.subr.bf16.mxu0 0
        %791 = vmatpush2.bf16.msra.mxu0 0
        %792 = vmatprep.subr.bf16.mxu0 0
        %793 = vmatpush2.bf16.msra.mxu0 0
        %794 = vmatprep.mubr.bf16.mxu0 0
        %795 = vmatmul.mubr.bf16.gmra.mxu0 %v720
        %v796 = vpop.f32.mrf.mxu0
        %v797 = vadd.f32 0.0, %v796
        %v798 = vpop.f32.mrf.mxu0
        %v799 = vadd.f32 0.0, %v798
        %v800 = vpop.f32.mrf.mxu0
        %v801 = vpop.f32.mrf.mxu0
        %802 = vdwg.mxu0
        %v803 = vadd.f32 %v716, %v756
        %v804 = vadd.f32 %v717, %v758
        %v805 = vadd.f32 %v718, %v797
        %v806 = vadd.f32 %v719, %v799
        %v807 = vxor.u32 %v803, 2147483648
        %v808 = vmul.f32 %v807, 1.442695
        %v809 = vpow.pop %v808
        %v810 = vadd.f32 %v809, 1.0
        %v811 = vrcp.pop %v810
        %v812 = vmul.f32 1.0, %v811
        %v813 = vxor.u32 %v804, 2147483648
        %v814 = vmul.f32 %v813, 1.442695
        %v815 = vpow.pop %v814
        %v816 = vadd.f32 %v815, 1.0
        %v817 = vrcp.pop %v816
        %v818 = vmul.f32 1.0, %v817
        %v819 = vtanh.pop %v805
        %v820 = vxor.u32 %v806, 2147483648
        %v821 = vmul.f32 %v820, 1.442695
        %v822 = vpow.pop %v821
        %v823 = vadd.f32 %v822, 1.0
        %v824 = vrcp.pop %v823
        %v825 = vmul.f32 1.0, %v824
        %v826 = vmul.f32 %v818, %v712
        %v827 = vmul.f32 %v812, %v819
        %v828 = vadd.f32 %v826, %v827
        %v829 = vtanh.pop %v828
        %v830 = vmul.f32 %v825, %v829
        %s831 = scalar_lea.vmem %s146, 128 [#allocation4]
        %v832 = vld [vmem:[%s831] sm:$0xff]
        %v833 = vld [vmem:[%s831 + $0x8] sm:$0xff]
        %v834 = vld [vmem:[%s831 + $0x10] sm:$0xff]
        %v835 = vld [vmem:[%s831 + $0x18] sm:$0xff]
        %v836 = vpack.c.bf16 %v830, %v830
        %837 = vmatprep.subr.bf16.mxu0 %v338
        %838 = vmatpush1.bf16.msra.mxu0 %v337
        %839 = vmatprep.subr.bf16.mxu0 %v334
        %840 = vmatpush1.bf16.msra.mxu0 %v333
        %841 = vmatprep.subr.bf16.mxu0 %v330
        %842 = vmatpush1.bf16.msra.mxu0 %v329
        %843 = vmatprep.subr.bf16.mxu0 %v326
        %844 = vmatpush1.bf16.msra.mxu0 %v325
        %845 = vmatprep.subr.bf16.mxu0 %v322
        %846 = vmatpush1.bf16.msra.mxu0 %v321
        %847 = vmatprep.subr.bf16.mxu0 %v318
        %848 = vmatpush1.bf16.msra.mxu0 %v317
        %849 = vmatprep.subr.bf16.mxu0 %v314
        %850 = vmatpush1.bf16.msra.mxu0 %v313
        %851 = vmatprep.subr.bf16.mxu0 %v310
        %852 = vmatpush1.bf16.msra.mxu0 %v309
        %853 = vmatprep.subr.bf16.mxu0 0
        %854 = vmatpush2.bf16.msra.mxu0 0
        %855 = vmatprep.subr.bf16.mxu0 0
        %856 = vmatpush2.bf16.msra.mxu0 0
        %857 = vmatprep.subr.bf16.mxu0 0
        %858 = vmatpush2.bf16.msra.mxu0 0
        %859 = vmatprep.subr.bf16.mxu0 0
        %860 = vmatpush2.bf16.msra.mxu0 0
        %861 = vmatprep.subr.bf16.mxu0 0
        %862 = vmatpush2.bf16.msra.mxu0 0
        %863 = vmatprep.subr.bf16.mxu0 0
        %864 = vmatpush2.bf16.msra.mxu0 0
        %865 = vmatprep.subr.bf16.mxu0 0
        %866 = vmatpush2.bf16.msra.mxu0 0
        %867 = vmatprep.subr.bf16.mxu0 0
        %868 = vmatpush2.bf16.msra.mxu0 0
        %869 = vmatprep.mubr.bf16.mxu0 0
        %870 = vmatmul.mubr.bf16.gmra.mxu0 %v836
        %v871 = vpop.f32.mrf.mxu0
        %v872 = vadd.f32 0.0, %v871
        %v873 = vpop.f32.mrf.mxu0
        %v874 = vadd.f32 0.0, %v873
        %v875 = vpop.f32.mrf.mxu0
        %v876 = vpop.f32.mrf.mxu0
        %877 = vdwg.mxu0
        %878 = vmatprep.subr.bf16.mxu0 %v340
        %879 = vmatpush1.bf16.msra.mxu0 %v339
        %880 = vmatprep.subr.bf16.mxu0 %v336
        %881 = vmatpush1.bf16.msra.mxu0 %v335
        %882 = vmatprep.subr.bf16.mxu0 %v332
        %883 = vmatpush1.bf16.msra.mxu0 %v331
        %884 = vmatprep.subr.bf16.mxu0 %v328
        %885 = vmatpush1.bf16.msra.mxu0 %v327
        %886 = vmatprep.subr.bf16.mxu0 %v324
        %887 = vmatpush1.bf16.msra.mxu0 %v323
        %888 = vmatprep.subr.bf16.mxu0 %v320
        %889 = vmatpush1.bf16.msra.mxu0 %v319
        %890 = vmatprep.subr.bf16.mxu0 %v316
        %891 = vmatpush1.bf16.msra.mxu0 %v315
        %892 = vmatprep.subr.bf16.mxu0 %v312
        %893 = vmatpush1.bf16.msra.mxu0 %v311
        %894 = vmatprep.subr.bf16.mxu0 0
        %895 = vmatpush2.bf16.msra.mxu0 0
        %896 = vmatprep.subr.bf16.mxu0 0
        %897 = vmatpush2.bf16.msra.mxu0 0
        %898 = vmatprep.subr.bf16.mxu0 0
        %899 = vmatpush2.bf16.msra.mxu0 0
        %900 = vmatprep.subr.bf16.mxu0 0
        %901 = vmatpush2.bf16.msra.mxu0 0
        %902 = vmatprep.subr.bf16.mxu0 0
        %903 = vmatpush2.bf16.msra.mxu0 0
        %904 = vmatprep.subr.bf16.mxu0 0
        %905 = vmatpush2.bf16.msra.mxu0 0
        %906 = vmatprep.subr.bf16.mxu0 0
        %907 = vmatpush2.bf16.msra.mxu0 0
        %908 = vmatprep.subr.bf16.mxu0 0
        %909 = vmatpush2.bf16.msra.mxu0 0
        %910 = vmatprep.mubr.bf16.mxu0 0
        %911 = vmatmul.mubr.bf16.gmra.mxu0 %v836
        %v912 = vpop.f32.mrf.mxu0
        %v913 = vadd.f32 0.0, %v912
        %v914 = vpop.f32.mrf.mxu0
        %v915 = vadd.f32 0.0, %v914
        %v916 = vpop.f32.mrf.mxu0
        %v917 = vpop.f32.mrf.mxu0
        %918 = vdwg.mxu0
        %v919 = vadd.f32 %v832, %v872
        %v920 = vadd.f32 %v833, %v874
        %v921 = vadd.f32 %v834, %v913
        %v922 = vadd.f32 %v835, %v915
        %v923 = vxor.u32 %v919, 2147483648
        %v924 = vmul.f32 %v923, 1.442695
        %v925 = vpow.pop %v924
        %v926 = vadd.f32 %v925, 1.0
        %v927 = vrcp.pop %v926
        %v928 = vmul.f32 1.0, %v927
        %v929 = vxor.u32 %v920, 2147483648
        %v930 = vmul.f32 %v929, 1.442695
        %v931 = vpow.pop %v930
        %v932 = vadd.f32 %v931, 1.0
        %v933 = vrcp.pop %v932
        %v934 = vmul.f32 1.0, %v933
        %v935 = vtanh.pop %v921
        %v936 = vxor.u32 %v922, 2147483648
        %v937 = vmul.f32 %v936, 1.442695
        %v938 = vpow.pop %v937
        %v939 = vadd.f32 %v938, 1.0
        %v940 = vrcp.pop %v939
        %v941 = vmul.f32 1.0, %v940
        %v942 = vmul.f32 %v934, %v828
        %v943 = vmul.f32 %v928, %v935
        %v944 = vadd.f32 %v942, %v943
        %v945 = vtanh.pop %v944
        %v946 = vmul.f32 %v941, %v945
        %s947 = scalar_lea.vmem %s146, 160 [#allocation4]
        %v948 = vld [vmem:[%s947] sm:$0xff]
        %v949 = vld [vmem:[%s947 + $0x8] sm:$0xff]
        %v950 = vld [vmem:[%s947 + $0x10] sm:$0xff]
        %v951 = vld [vmem:[%s947 + $0x18] sm:$0xff]
        %v952 = vpack.c.bf16 %v946, %v946
        %953 = vmatprep.subr.bf16.mxu0 %v338
        %954 = vmatpush1.bf16.msra.mxu0 %v337
        %955 = vmatprep.subr.bf16.mxu0 %v334
        %956 = vmatpush1.bf16.msra.mxu0 %v333
        %957 = vmatprep.subr.bf16.mxu0 %v330
        %958 = vmatpush1.bf16.msra.mxu0 %v329
        %959 = vmatprep.subr.bf16.mxu0 %v326
        %960 = vmatpush1.bf16.msra.mxu0 %v325
        %961 = vmatprep.subr.bf16.mxu0 %v322
        %962 = vmatpush1.bf16.msra.mxu0 %v321
        %963 = vmatprep.subr.bf16.mxu0 %v318
        %964 = vmatpush1.bf16.msra.mxu0 %v317
        %965 = vmatprep.subr.bf16.mxu0 %v314
        %966 = vmatpush1.bf16.msra.mxu0 %v313
        %967 = vmatprep.subr.bf16.mxu0 %v310
        %968 = vmatpush1.bf16.msra.mxu0 %v309
        %969 = vmatprep.subr.bf16.mxu0 0
        %970 = vmatpush2.bf16.msra.mxu0 0
        %971 = vmatprep.subr.bf16.mxu0 0
        %972 = vmatpush2.bf16.msra.mxu0 0
        %973 = vmatprep.subr.bf16.mxu0 0
        %974 = vmatpush2.bf16.msra.mxu0 0
        %975 = vmatprep.subr.bf16.mxu0 0
        %976 = vmatpush2.bf16.msra.mxu0 0
        %977 = vmatprep.subr.bf16.mxu0 0
        %978 = vmatpush2.bf16.msra.mxu0 0
        %979 = vmatprep.subr.bf16.mxu0 0
        %980 = vmatpush2.bf16.msra.mxu0 0
        %981 = vmatprep.subr.bf16.mxu0 0
        %982 = vmatpush2.bf16.msra.mxu0 0
        %983 = vmatprep.subr.bf16.mxu0 0
        %984 = vmatpush2.bf16.msra.mxu0 0
        %985 = vmatprep.mubr.bf16.mxu0 0
        %986 = vmatmul.mubr.bf16.gmra.mxu0 %v952
        %v987 = vpop.f32.mrf.mxu0
        %v988 = vadd.f32 0.0, %v987
        %v989 = vpop.f32.mrf.mxu0
        %v990 = vadd.f32 0.0, %v989
        %v991 = vpop.f32.mrf.mxu0
        %v992 = vpop.f32.mrf.mxu0
        %993 = vdwg.mxu0
        %994 = vmatprep.subr.bf16.mxu0 %v340
        %995 = vmatpush1.bf16.msra.mxu0 %v339
        %996 = vmatprep.subr.bf16.mxu0 %v336
        %997 = vmatpush1.bf16.msra.mxu0 %v335
        %998 = vmatprep.subr.bf16.mxu0 %v332
        %999 = vmatpush1.bf16.msra.mxu0 %v331
        %1000 = vmatprep.subr.bf16.mxu0 %v328
        %1001 = vmatpush1.bf16.msra.mxu0 %v327
        %1002 = vmatprep.subr.bf16.mxu0 %v324
        %1003 = vmatpush1.bf16.msra.mxu0 %v323
        %1004 = vmatprep.subr.bf16.mxu0 %v320
        %1005 = vmatpush1.bf16.msra.mxu0 %v319
        %1006 = vmatprep.subr.bf16.mxu0 %v316
        %1007 = vmatpush1.bf16.msra.mxu0 %v315
        %1008 = vmatprep.subr.bf16.mxu0 %v312
        %1009 = vmatpush1.bf16.msra.mxu0 %v311
        %1010 = vmatprep.subr.bf16.mxu0 0
        %1011 = vmatpush2.bf16.msra.mxu0 0
        %1012 = vmatprep.subr.bf16.mxu0 0
        %1013 = vmatpush2.bf16.msra.mxu0 0
        %1014 = vmatprep.subr.bf16.mxu0 0
        %1015 = vmatpush2.bf16.msra.mxu0 0
        %1016 = vmatprep.subr.bf16.mxu0 0
        %1017 = vmatpush2.bf16.msra.mxu0 0
        %1018 = vmatprep.subr.bf16.mxu0 0
        %1019 = vmatpush2.bf16.msra.mxu0 0
        %1020 = vmatprep.subr.bf16.mxu0 0
        %1021 = vmatpush2.bf16.msra.mxu0 0
        %1022 = vmatprep.subr.bf16.mxu0 0
        %1023 = vmatpush2.bf16.msra.mxu0 0
        %1024 = vmatprep.subr.bf16.mxu0 0
        %1025 = vmatpush2.bf16.msra.mxu0 0
        %1026 = vmatprep.mubr.bf16.mxu0 0
        %1027 = vmatmul.mubr.bf16.gmra.mxu0 %v952
        %v1028 = vpop.f32.mrf.mxu0
        %v1029 = vadd.f32 0.0, %v1028
        %v1030 = vpop.f32.mrf.mxu0
        %v1031 = vadd.f32 0.0, %v1030
        %v1032 = vpop.f32.mrf.mxu0
        %v1033 = vpop.f32.mrf.mxu0
        %1034 = vdwg.mxu0
        %v1035 = vadd.f32 %v948, %v988
        %v1036 = vadd.f32 %v949, %v990
        %v1037 = vadd.f32 %v950, %v1029
        %v1038 = vadd.f32 %v951, %v1031
        %v1039 = vxor.u32 %v1035, 2147483648
        %v1040 = vmul.f32 %v1039, 1.442695
        %v1041 = vpow.pop %v1040
        %v1042 = vadd.f32 %v1041, 1.0
        %v1043 = vrcp.pop %v1042
        %v1044 = vmul.f32 1.0, %v1043
        %v1045 = vxor.u32 %v1036, 2147483648
        %v1046 = vmul.f32 %v1045, 1.442695
        %v1047 = vpow.pop %v1046
        %v1048 = vadd.f32 %v1047, 1.0
        %v1049 = vrcp.pop %v1048
        %v1050 = vmul.f32 1.0, %v1049
        %v1051 = vtanh.pop %v1037
        %v1052 = vxor.u32 %v1038, 2147483648
        %v1053 = vmul.f32 %v1052, 1.442695
        %v1054 = vpow.pop %v1053
        %v1055 = vadd.f32 %v1054, 1.0
        %v1056 = vrcp.pop %v1055
        %v1057 = vmul.f32 1.0, %v1056
        %v1058 = vmul.f32 %v1050, %v944
        %v1059 = vmul.f32 %v1044, %v1051
        %v1060 = vadd.f32 %v1058, %v1059
        %v1061 = vtanh.pop %v1060
        %v1062 = vmul.f32 %v1057, %v1061
        %s1063 = scalar_lea.vmem %s146, 192 [#allocation4]
        %v1064 = vld [vmem:[%s1063] sm:$0xff]
        %v1065 = vld [vmem:[%s1063 + $0x8] sm:$0xff]
        %v1066 = vld [vmem:[%s1063 + $0x10] sm:$0xff]
        %v1067 = vld [vmem:[%s1063 + $0x18] sm:$0xff]
        %v1068 = vpack.c.bf16 %v1062, %v1062
        %1069 = vmatprep.subr.bf16.mxu0 %v338
        %1070 = vmatpush1.bf16.msra.mxu0 %v337
        %1071 = vmatprep.subr.bf16.mxu0 %v334
        %1072 = vmatpush1.bf16.msra.mxu0 %v333
        %1073 = vmatprep.subr.bf16.mxu0 %v330
        %1074 = vmatpush1.bf16.msra.mxu0 %v329
        %1075 = vmatprep.subr.bf16.mxu0 %v326
        %1076 = vmatpush1.bf16.msra.mxu0 %v325
        %1077 = vmatprep.subr.bf16.mxu0 %v322
        %1078 = vmatpush1.bf16.msra.mxu0 %v321
        %1079 = vmatprep.subr.bf16.mxu0 %v318
        %1080 = vmatpush1.bf16.msra.mxu0 %v317
        %1081 = vmatprep.subr.bf16.mxu0 %v314
        %1082 = vmatpush1.bf16.msra.mxu0 %v313
        %1083 = vmatprep.subr.bf16.mxu0 %v310
        %1084 = vmatpush1.bf16.msra.mxu0 %v309
        %1085 = vmatprep.subr.bf16.mxu0 0
        %1086 = vmatpush2.bf16.msra.mxu0 0
        %1087 = vmatprep.subr.bf16.mxu0 0
        %1088 = vmatpush2.bf16.msra.mxu0 0
        %1089 = vmatprep.subr.bf16.mxu0 0
        %1090 = vmatpush2.bf16.msra.mxu0 0
        %1091 = vmatprep.subr.bf16.mxu0 0
        %1092 = vmatpush2.bf16.msra.mxu0 0
        %1093 = vmatprep.subr.bf16.mxu0 0
        %1094 = vmatpush2.bf16.msra.mxu0 0
        %1095 = vmatprep.subr.bf16.mxu0 0
        %1096 = vmatpush2.bf16.msra.mxu0 0
        %1097 = vmatprep.subr.bf16.mxu0 0
        %1098 = vmatpush2.bf16.msra.mxu0 0
        %1099 = vmatprep.subr.bf16.mxu0 0
        %1100 = vmatpush2.bf16.msra.mxu0 0
        %1101 = vmatprep.mubr.bf16.mxu0 0
        %1102 = vmatmul.mubr.bf16.gmra.mxu0 %v1068
        %v1103 = vpop.f32.mrf.mxu0
        %v1104 = vadd.f32 0.0, %v1103
        %v1105 = vpop.f32.mrf.mxu0
        %v1106 = vadd.f32 0.0, %v1105
        %v1107 = vpop.f32.mrf.mxu0
        %v1108 = vpop.f32.mrf.mxu0
        %1109 = vdwg.mxu0
        %1110 = vmatprep.subr.bf16.mxu0 %v340
        %1111 = vmatpush1.bf16.msra.mxu0 %v339
        %1112 = vmatprep.subr.bf16.mxu0 %v336
        %1113 = vmatpush1.bf16.msra.mxu0 %v335
        %1114 = vmatprep.subr.bf16.mxu0 %v332
        %1115 = vmatpush1.bf16.msra.mxu0 %v331
        %1116 = vmatprep.subr.bf16.mxu0 %v328
        %1117 = vmatpush1.bf16.msra.mxu0 %v327
        %1118 = vmatprep.subr.bf16.mxu0 %v324
        %1119 = vmatpush1.bf16.msra.mxu0 %v323
        %1120 = vmatprep.subr.bf16.mxu0 %v320
        %1121 = vmatpush1.bf16.msra.mxu0 %v319
        %1122 = vmatprep.subr.bf16.mxu0 %v316
        %1123 = vmatpush1.bf16.msra.mxu0 %v315
        %1124 = vmatprep.subr.bf16.mxu0 %v312
        %1125 = vmatpush1.bf16.msra.mxu0 %v311
        %1126 = vmatprep.subr.bf16.mxu0 0
        %1127 = vmatpush2.bf16.msra.mxu0 0
        %1128 = vmatprep.subr.bf16.mxu0 0
        %1129 = vmatpush2.bf16.msra.mxu0 0
        %1130 = vmatprep.subr.bf16.mxu0 0
        %1131 = vmatpush2.bf16.msra.mxu0 0
        %1132 = vmatprep.subr.bf16.mxu0 0
        %1133 = vmatpush2.bf16.msra.mxu0 0
        %1134 = vmatprep.subr.bf16.mxu0 0
        %1135 = vmatpush2.bf16.msra.mxu0 0
        %1136 = vmatprep.subr.bf16.mxu0 0
        %1137 = vmatpush2.bf16.msra.mxu0 0
        %1138 = vmatprep.subr.bf16.mxu0 0
        %1139 = vmatpush2.bf16.msra.mxu0 0
        %1140 = vmatprep.subr.bf16.mxu0 0
        %1141 = vmatpush2.bf16.msra.mxu0 0
        %1142 = vmatprep.mubr.bf16.mxu0 0
        %1143 = vmatmul.mubr.bf16.gmra.mxu0 %v1068
        %v1144 = vpop.f32.mrf.mxu0
        %v1145 = vadd.f32 0.0, %v1144
        %v1146 = vpop.f32.mrf.mxu0
        %v1147 = vadd.f32 0.0, %v1146
        %v1148 = vpop.f32.mrf.mxu0
        %v1149 = vpop.f32.mrf.mxu0
        %1150 = vdwg.mxu0
        %v1151 = vadd.f32 %v1064, %v1104
        %v1152 = vadd.f32 %v1065, %v1106
        %v1153 = vadd.f32 %v1066, %v1145
        %v1154 = vadd.f32 %v1067, %v1147
        %v1155 = vxor.u32 %v1151, 2147483648
        %v1156 = vmul.f32 %v1155, 1.442695
        %v1157 = vpow.pop %v1156
        %v1158 = vadd.f32 %v1157, 1.0
        %v1159 = vrcp.pop %v1158
        %v1160 = vmul.f32 1.0, %v1159
        %v1161 = vxor.u32 %v1152, 2147483648
        %v1162 = vmul.f32 %v1161, 1.442695
        %v1163 = vpow.pop %v1162
        %v1164 = vadd.f32 %v1163, 1.0
        %v1165 = vrcp.pop %v1164
        %v1166 = vmul.f32 1.0, %v1165
        %v1167 = vtanh.pop %v1153
        %v1168 = vxor.u32 %v1154, 2147483648
        %v1169 = vmul.f32 %v1168, 1.442695
        %v1170 = vpow.pop %v1169
        %v1171 = vadd.f32 %v1170, 1.0
        %v1172 = vrcp.pop %v1171
        %v1173 = vmul.f32 1.0, %v1172
        %v1174 = vmul.f32 %v1166, %v1060
        %v1175 = vmul.f32 %v1160, %v1167
        %v1176 = vadd.f32 %v1174, %v1175
        %v1177 = vtanh.pop %v1176
        %v1178 = vmul.f32 %v1173, %v1177
        %s1179 = scalar_lea.vmem %s146, 224 [#allocation4]
        %v1180 = vld [vmem:[%s1179] sm:$0xff]
        %v1181 = vld [vmem:[%s1179 + $0x8] sm:$0xff]
        %v1182 = vld [vmem:[%s1179 + $0x10] sm:$0xff]
        %v1183 = vld [vmem:[%s1179 + $0x18] sm:$0xff]
        %v1184 = vpack.c.bf16 %v1178, %v1178
        %1185 = vmatprep.subr.bf16.mxu0 %v338
        %1186 = vmatpush1.bf16.msra.mxu0 %v337
        %1187 = vmatprep.subr.bf16.mxu0 %v334
        %1188 = vmatpush1.bf16.msra.mxu0 %v333
        %1189 = vmatprep.subr.bf16.mxu0 %v330
        %1190 = vmatpush1.bf16.msra.mxu0 %v329
        %1191 = vmatprep.subr.bf16.mxu0 %v326
        %1192 = vmatpush1.bf16.msra.mxu0 %v325
        %1193 = vmatprep.subr.bf16.mxu0 %v322
        %1194 = vmatpush1.bf16.msra.mxu0 %v321
        %1195 = vmatprep.subr.bf16.mxu0 %v318
        %1196 = vmatpush1.bf16.msra.mxu0 %v317
        %1197 = vmatprep.subr.bf16.mxu0 %v314
        %1198 = vmatpush1.bf16.msra.mxu0 %v313
        %1199 = vmatprep.subr.bf16.mxu0 %v310
        %1200 = vmatpush1.bf16.msra.mxu0 %v309
        %1201 = vmatprep.subr.bf16.mxu0 0
        %1202 = vmatpush2.bf16.msra.mxu0 0
        %1203 = vmatprep.subr.bf16.mxu0 0
        %1204 = vmatpush2.bf16.msra.mxu0 0
        %1205 = vmatprep.subr.bf16.mxu0 0
        %1206 = vmatpush2.bf16.msra.mxu0 0
        %1207 = vmatprep.subr.bf16.mxu0 0
        %1208 = vmatpush2.bf16.msra.mxu0 0
        %1209 = vmatprep.subr.bf16.mxu0 0
        %1210 = vmatpush2.bf16.msra.mxu0 0
        %1211 = vmatprep.subr.bf16.mxu0 0
        %1212 = vmatpush2.bf16.msra.mxu0 0
        %1213 = vmatprep.subr.bf16.mxu0 0
        %1214 = vmatpush2.bf16.msra.mxu0 0
        %1215 = vmatprep.subr.bf16.mxu0 0
        %1216 = vmatpush2.bf16.msra.mxu0 0
        %1217 = vmatprep.mubr.bf16.mxu0 0
        %1218 = vmatmul.mubr.bf16.gmra.mxu0 %v1184
        %v1219 = vpop.f32.mrf.mxu0
        %v1220 = vadd.f32 0.0, %v1219
        %v1221 = vpop.f32.mrf.mxu0
        %v1222 = vadd.f32 0.0, %v1221
        %v1223 = vpop.f32.mrf.mxu0
        %v1224 = vpop.f32.mrf.mxu0
        %1225 = vdwg.mxu0
        %1226 = vmatprep.subr.bf16.mxu0 %v340
        %1227 = vmatpush1.bf16.msra.mxu0 %v339
        %1228 = vmatprep.subr.bf16.mxu0 %v336
        %1229 = vmatpush1.bf16.msra.mxu0 %v335
        %1230 = vmatprep.subr.bf16.mxu0 %v332
        %1231 = vmatpush1.bf16.msra.mxu0 %v331
        %1232 = vmatprep.subr.bf16.mxu0 %v328
        %1233 = vmatpush1.bf16.msra.mxu0 %v327
        %1234 = vmatprep.subr.bf16.mxu0 %v324
        %1235 = vmatpush1.bf16.msra.mxu0 %v323
        %1236 = vmatprep.subr.bf16.mxu0 %v320
        %1237 = vmatpush1.bf16.msra.mxu0 %v319
        %1238 = vmatprep.subr.bf16.mxu0 %v316
        %1239 = vmatpush1.bf16.msra.mxu0 %v315
        %1240 = vmatprep.subr.bf16.mxu0 %v312
        %1241 = vmatpush1.bf16.msra.mxu0 %v311
        %1242 = vmatprep.subr.bf16.mxu0 0
        %1243 = vmatpush2.bf16.msra.mxu0 0
        %1244 = vmatprep.subr.bf16.mxu0 0
        %1245 = vmatpush2.bf16.msra.mxu0 0
        %1246 = vmatprep.subr.bf16.mxu0 0
        %1247 = vmatpush2.bf16.msra.mxu0 0
        %1248 = vmatprep.subr.bf16.mxu0 0
        %1249 = vmatpush2.bf16.msra.mxu0 0
        %1250 = vmatprep.subr.bf16.mxu0 0
        %1251 = vmatpush2.bf16.msra.mxu0 0
        %1252 = vmatprep.subr.bf16.mxu0 0
        %1253 = vmatpush2.bf16.msra.mxu0 0
        %1254 = vmatprep.subr.bf16.mxu0 0
        %1255 = vmatpush2.bf16.msra.mxu0 0
        %1256 = vmatprep.subr.bf16.mxu0 0
        %1257 = vmatpush2.bf16.msra.mxu0 0
        %1258 = vmatprep.mubr.bf16.mxu0 0
        %1259 = vmatmul.mubr.bf16.gmra.mxu0 %v1184
        %v1260 = vpop.f32.mrf.mxu0
        %v1261 = vadd.f32 0.0, %v1260
        %v1262 = vpop.f32.mrf.mxu0
        %v1263 = vadd.f32 0.0, %v1262
        %v1264 = vpop.f32.mrf.mxu0
        %v1265 = vpop.f32.mrf.mxu0
        %1266 = vdwg.mxu0
        %v1267 = vadd.f32 %v1180, %v1220
        %v1268 = vadd.f32 %v1181, %v1222
        %v1269 = vadd.f32 %v1182, %v1261
        %v1270 = vadd.f32 %v1183, %v1263
        %v1271 = vxor.u32 %v1267, 2147483648
        %v1272 = vmul.f32 %v1271, 1.442695
        %v1273 = vpow.pop %v1272
        %v1274 = vadd.f32 %v1273, 1.0
        %v1275 = vrcp.pop %v1274
        %v1276 = vmul.f32 1.0, %v1275
        %v1277 = vxor.u32 %v1268, 2147483648
        %v1278 = vmul.f32 %v1277, 1.442695
        %v1279 = vpow.pop %v1278
        %v1280 = vadd.f32 %v1279, 1.0
        %v1281 = vrcp.pop %v1280
        %v1282 = vmul.f32 1.0, %v1281
        %v1283 = vtanh.pop %v1269
        %v1284 = vxor.u32 %v1270, 2147483648
        %v1285 = vmul.f32 %v1284, 1.442695
        %v1286 = vpow.pop %v1285
        %v1287 = vadd.f32 %v1286, 1.0
        %v1288 = vrcp.pop %v1287
        %v1289 = vmul.f32 1.0, %v1288
        %v1290 = vmul.f32 %v1282, %v1176
        %v1291 = vmul.f32 %v1276, %v1283
        %v1292 = vadd.f32 %v1290, %v1291
        %v1293 = vtanh.pop %v1292
        %v1294 = vmul.f32 %v1289, %v1293
        %1295 = vst [vmem:[#allocation2] sm:$0xff] %v1294
        %1296 = vst [vmem:[#allocation3] sm:$0xff] %v1292
        %p1297 = scmp.eq.s32.totalorder %s18, 1
        // Predicated region
        $region41: #{tpu_custom_call.1} parent=27 // pred_check
          %p1298 = pneg %p1297
        $region42: #{tpu_custom_call.1} parent=27 // pred_check_branch
          %1300 = sbr.rel (%p1298) target = $region44
        $region43: #{tpu_custom_call.1} parent=27 // pred_region
          %1301 = vst [vmem:[#allocation9] sm:$0xff] %v1294
        $region44: #{tpu_custom_call.1} parent=27 // pred_fallthru
          _
        // Predicated region
        $region45: #{tpu_custom_call.1} parent=27 // pred_check
          %p1302 = pneg %p78
        $region46: #{tpu_custom_call.1} parent=27 // pred_check_branch
          %1304 = sbr.rel (%p1302) target = $region48
        $region47: #{tpu_custom_call.1} parent=27 // pred_region
          %s1306 = ssub.s32 128, 128
          %1307 = vsyncadd [#allocation6], %s1306
          %s1309 = sshll.u32 [#allocation9], 4
          %s1310 = int_to_ptr.vmem [resolvable:$true] %s1309
          %1312 = dma.vmem_to_hbm [thread:$0]  %s1310, 128, %s2, [#allocation6]
        $region48: #{tpu_custom_call.1} parent=27 // pred_fallthru
          _
        // Predicated region
        $region49: #{tpu_custom_call.1} parent=27 // pred_check
          %p1313 = pneg %p78
        $region50: #{tpu_custom_call.1} parent=27 // pred_check_branch
          %1315 = sbr.rel (%p1313) target = $region52
        $region51: #{tpu_custom_call.1} parent=27 // pred_region
          %1316 = dma.done [#allocation6], 128
        $region52: #{tpu_custom_call.1} parent=27 // pred_fallthru
          _
      $region28: #{tpu_custom_call.1} parent=5 // pred_fallthru
        _
      %p1317 = scmp.le.s32.totalorder 2, %s13
      // Predicated region
      $region53: #{tpu_custom_call.1} parent=5 // pred_check
        %p1318 = pneg %p1317
      $region54: #{tpu_custom_call.1} parent=5 // pred_check_branch
        %1320 = sbr.rel (%p1318) target = $region56
      $region55: #{tpu_custom_call.1} parent=5 // pred_region
        %s1321 = ssub.s32 %s13, 2
      $region56: #{tpu_custom_call.1} parent=5 // pred_fallthru
        _
    $region6: #{tpu_custom_call.1} parent=1 // loop_footer
      %s17 = sadd.s32 1, %s13
    $region7: #{tpu_custom_call.1} parent=1 // loop_footer_branch
      %12 = sbr.rel target = $region3
    $region8: #{tpu_custom_call.1} parent=1 // loop_exit
      _
    %1322 = vsyncpa [#allocation5], 1
    %s1323 = scalar_lea.sflag [#allocation5], 1
    %1324 = vsyncpa %s1323, 1
    %1325 = vsyncpa [#allocation8], 1
    %1326 = vsyncpa [#allocation6], 1
    %s1327 = scalar_lea.sflag [#allocation6], 1
    %1328 = vsyncpa %s1327, 1

</llo_original>
